<compile_context>
chip_gen: v7x
topology: tpu7x:2x2x1
jax: 0.10.0
libtpu: 0.0.40
codegen_flags: <defaults>
</compile_context>

<pallas_src>
import functools

import jax
import jax.numpy as jnp
from jax.experimental import pallas as pl
from jax.experimental.pallas import tpu as pltpu


# ---------------- kernel 1: centered per-column sum-of-squares of t = X @ W ----------------
def _colvar_kernel(x_ref, w_ref, tmu_ref, ssq_ref, *, m_total):
    i = pl.program_id(0)

    @pl.when(i == 0)
    def _():
        ssq_ref[...] = jnp.zeros_like(ssq_ref)

    # same bf16 matmul (exact products, f32 accumulation) as the main fused kernel
    t = jnp.dot(x_ref[...], w_ref[...], preferred_element_type=jnp.float32)
    s = t - tmu_ref[...]                                   # center at the exact column mean
    tm = x_ref.shape[0]
    rows = i * tm + jax.lax.broadcasted_iota(jnp.int32, (tm, 1), 0)
    s = jnp.where(rows < m_total, s, 0.0)                  # mask the ragged boundary block
    ssq_ref[...] += jnp.sum(s * s, axis=0, keepdims=True)


# ---------------- kernel 2: fused deconv-GEMM + folded-BN affine + PReLU ----------------
def _deconv_bn_prelu_kernel(x_ref, w_ref, scale_ref, shift_ref, alpha_ref, o_ref):
    # x_ref: (tm, Cin) bf16, w_ref: (Cin, Ncols) bf16, params: (1, Ncols) f32
    t = jnp.dot(x_ref[...], w_ref[...], preferred_element_type=jnp.float32)
    yn = t * scale_ref[...] + shift_ref[...]                # bias/mean/var/gamma/beta pre-folded
    o_ref[...] = jnp.where(yn >= 0, yn, alpha_ref[...] * yn).astype(o_ref.dtype)


def _pick_tm(m_rows, cin, ncols, target_bytes=6 * 1024 * 1024, lo=256, hi=4096):
    """Row tile: ~6 MiB of (bf16 in + bf16 out) tile per grid step, >=2 steps, v7x-safe."""
    per_row = cin * 2 + ncols * 2
    tm = max(lo, min(hi, target_bytes // per_row))
    tm = min(tm, max(8, pl.cdiv(m_rows, 2)))    # keep >= 2 grid steps for megacore
    tm = max(8, (tm // 8) * 8)                  # sublane multiple
    return int(tm)


@jax.jit
def deconv_bn_prelu(x, w, b, gamma, beta, alpha, eps=1e-5):
    N, Cin, D, H, W_ = x.shape
    Cout = w.shape[1]
    M = N * D * H * W_
    Ncols = Cout * 8
    tm = _pick_tm(M, Cin, Ncols)
    grid = (pl.cdiv(M, tm),)

    # ---- GEMM layout (rows (n,d,h,w); columns (kd,kh,kw,cout) -> channel-minor scatter) ----
    # TODO(synk): in a channels-last (NDHWC) port of the model this input transpose disappears.
    x_bf = jnp.transpose(x, (0, 2, 3, 4, 1)).reshape(M, Cin).astype(jnp.bfloat16)
    w_bf = jnp.transpose(w, (0, 2, 3, 4, 1)).reshape(Cin, Ncols).astype(jnp.bfloat16)
    wf = w_bf.astype(jnp.float32)               # exact values the MXU multiplies (tiny array)

    # ---- BatchNorm batch statistics without materializing f32 copies of X ----
    hi_prec = jax.lax.Precision.HIGHEST
    mu_x = jnp.sum(x_bf, axis=0, dtype=jnp.float32) / M        # one fused bf16 pass over X
    t_mu = jnp.dot(mu_x, wf, precision=hi_prec)                 # (Ncols,) per-column mean of X@W
    col_mean = t_mu + jnp.tile(b.astype(jnp.float32), 8)        # (Ncols,)

    ssq = pl.pallas_call(
        functools.partial(_colvar_kernel, m_total=M),
        out_shape=jax.ShapeDtypeStruct((1, Ncols), jnp.float32),
        grid_spec=pltpu.PrefetchScalarGridSpec(
            num_scalar_prefetch=0,
            grid=grid,
            in_specs=[pl.BlockSpec((tm, Cin), lambda i: (i, 0)),
                      pl.BlockSpec((Cin, Ncols), lambda i: (0, 0)),
                      pl.BlockSpec((1, Ncols), lambda i: (0, 0))],
            out_specs=pl.BlockSpec((1, Ncols), lambda i: (0, 0))),
        compiler_params=pltpu.CompilerParams(
            dimension_semantics=("arbitrary",),                 # reduction axis (accumulator)
            vmem_limit_bytes=32 * 1024 * 1024),
    )(x_bf, w_bf, t_mu.reshape(1, Ncols))
    col_var = ssq[0] / M                                        # biased, like PyTorch BN

    # per-channel stats (each channel owns 8 columns): law of total variance
    m8 = col_mean.reshape(8, Cout)
    v8 = col_var.reshape(8, Cout)
    ch_mean = jnp.mean(m8, axis=0)
    ch_var = jnp.mean(v8, axis=0) + jnp.mean((m8 - ch_mean[None, :]) ** 2, axis=0)
    invstd = jax.lax.rsqrt(ch_var + eps)
    # TODO(synk): PyTorch BatchNorm3d running-stat (momentum/unbiased var) update not emulated.

    # fold bias + BN affine:  BN(t + b) = t*scale + shift, with t = X @ W
    scale_ch = gamma.astype(jnp.float32) * invstd
    shift_ch = (b.astype(jnp.float32) - ch_mean) * scale_ch + beta.astype(jnp.float32)
    scale_cols = jnp.tile(scale_ch, 8).reshape(1, Ncols)
    shift_cols = jnp.tile(shift_ch, 8).reshape(1, Ncols)
    alpha_cols = jnp.tile(alpha.astype(jnp.float32), 8).reshape(1, Ncols)

    # ---- fused pass: matmul -> BN affine -> PReLU, big tensor written exactly once (bf16) ----
    out2d = pl.pallas_call(
        _deconv_bn_prelu_kernel,
        out_shape=jax.ShapeDtypeStruct((M, Ncols), jnp.bfloat16),
        grid_spec=pltpu.PrefetchScalarGridSpec(
            num_scalar_prefetch=0,
            grid=grid,
            in_specs=[pl.BlockSpec((tm, Cin), lambda i: (i, 0)),
                      pl.BlockSpec((Cin, Ncols), lambda i: (0, 0)),
                      pl.BlockSpec((1, Ncols), lambda i: (0, 0)),
                      pl.BlockSpec((1, Ncols), lambda i: (0, 0)),
                      pl.BlockSpec((1, Ncols), lambda i: (0, 0))],
            out_specs=pl.BlockSpec((tm, Ncols), lambda i: (i, 0))),
        compiler_params=pltpu.CompilerParams(
            dimension_semantics=("parallel",),                  # no accumulator -> megacore-safe
            vmem_limit_bytes=32 * 1024 * 1024),
    )(x_bf, w_bf, scale_cols, shift_cols, alpha_cols)

    # ---- scatter exclusive 2x2x2 blocks back to NCDHW (channel-minor contiguous chunks) ----
    out = out2d.reshape(N, D, H, W_, 2, 2, 2, Cout)
    out = jnp.transpose(out, (0, 7, 1, 4, 2, 5, 3, 6))          # (N, Cout, D,kd, H,kh, W,kw)
    return out.reshape(N, Cout, 2 * D, 2 * H, 2 * W_)


# ---------------- pure-JAX reference (mirrors the kernel's bf16 operand precision) ----------------
def ref_forward(x, w, b, gamma, beta, alpha, eps=1e-5):
    xq = x.astype(jnp.bfloat16).astype(jnp.float32)
    wq = w.astype(jnp.bfloat16).astype(jnp.float32)
    N, Cin, D, H, W_ = x.shape
    Cout = w.shape[1]
    y = jnp.einsum('ncdhw,copqr->ndhwopqr', xq, wq)
    y = y + b[None, None, None, None, :, None, None, None]
    y = jnp.transpose(y, (0, 4, 1, 5, 2, 6, 3, 7)).reshape(N, Cout, 2 * D, 2 * H, 2 * W_)
    mean = y.mean(axis=(0, 2, 3, 4), keepdims=True)
    var = ((y - mean) ** 2).mean(axis=(0, 2, 3, 4), keepdims=True)   # biased (PyTorch BN)
    yn = (y - mean) / jnp.sqrt(var + eps)
    yn = yn * gamma[None, :, None, None, None] + beta[None, :, None, None, None]
    a = alpha[None, :, None, None, None]
    return jnp.where(yn >= 0, yn, a * yn)


if __name__ == "__main__":
    key = jax.random.PRNGKey(0)
    k1, k2, k3, k4, k5 = jax.random.split(key, 5)

    # Shapes follow ResVNet_DenseASPP.up1: ConvTranspose3d(64 -> 16, kernel=2, stride=2),
    # so Ncols = Cout*8 = 128 (lane-dense); small spatial volume for the demo.
    N, Cin, Cout, D, H, W_ = 2, 64, 16, 8, 8, 8

    x = jax.random.normal(k1, (N, Cin, D, H, W_), dtype=jnp.float32)
    # ConvTranspose3d weight layout: (in_channels, out_channels, 2, 2, 2)
    w = jax.random.normal(k2, (Cin, Cout, 2, 2, 2), dtype=jnp.float32) * 0.1
    b = jax.random.normal(k3, (Cout,), dtype=jnp.float32) * 0.1
    gamma = 1.0 + 0.1 * jax.random.normal(k4, (Cout,), dtype=jnp.float32)
    beta = 0.1 * jax.random.normal(k5, (Cout,), dtype=jnp.float32)
    alpha = jnp.full((Cout,), 0.25, dtype=jnp.float32)            # PReLU default init

    out = deconv_bn_prelu(x, w, b, gamma, beta, alpha)
    out = jax.block_until_ready(out)

    ref = ref_forward(x, w, b, gamma, beta, alpha)
    assert out.shape == (N, Cout, 2 * D, 2 * H, 2 * W_)
    assert out.dtype == jnp.bfloat16
    # tolerance loosened vs the f32-output version: the kernel now emits bf16 activations.
    assert jnp.allclose(out.astype(jnp.float32), ref, rtol=2e-2, atol=2e-2), "mismatch vs reference"

    print("KERNEL_OK")
</pallas_src>

<mosaic_0001>
module attributes {stable_mosaic.version = 11 : i64} {
  func.func @_colvar_kernel(%arg0: i32, %arg1: memref<512x64xbf16, #tpu.memory_space<vmem>>, %arg2: memref<64x128xbf16, #tpu.memory_space<vmem>>, %arg3: memref<1x128xf32, #tpu.memory_space<vmem>>, %arg4: memref<1x128xf32, #tpu.memory_space<vmem>>) attributes {dimension_semantics = [#tpu.dimension_semantics<arbitrary>], iteration_bounds = array<i64: 2>, scalar_prefetch = 0 : i64, scratch_operands = 0 : i64, tpu.core_type = #tpu.core_type<tc>, window_params = [{transform_indices = @transform_0, window_bounds = array<i64: 512, 64>}, {pipeline_mode = #tpu.pipeline_mode<synchronous>, transform_indices = @transform_1, window_bounds = array<i64: 64, 128>}, {pipeline_mode = #tpu.pipeline_mode<synchronous>, transform_indices = @transform_2, window_bounds = array<i64: 1, 128>}, {pipeline_mode = #tpu.pipeline_mode<synchronous>, transform_indices = @transform_3, window_bounds = array<i64: 1, 128>}]} {
    %c0_i32 = arith.constant 0 : i32
    %0 = arith.cmpi eq, %arg0, %c0_i32 : i32
    %1 = arith.extui %0 : i1 to i32
    %c0_i32_0 = arith.constant 0 : i32
    %2 = arith.cmpi ne, %1, %c0_i32_0 : i32
    scf.if %2 {
      %cst_12 = arith.constant 0.000000e+00 : f32
      %25 = vector.broadcast %cst_12 : f32 to vector<1x128xf32>
      %c0_13 = arith.constant 0 : index
      %c0_14 = arith.constant 0 : index
      %26 = vector.load %arg4[%c0_13, %c0_14] : memref<1x128xf32, #tpu.memory_space<vmem>>, vector<1x128xf32>
      tpu.vector_store %arg4[%c0_13, %c0_14], %25 {strides = array<i32>} : memref<1x128xf32, #tpu.memory_space<vmem>>, vector<1x128xf32>,
    } else {
    }
    %c0 = arith.constant 0 : index
    %c0_1 = arith.constant 0 : index
    %3 = vector.load %arg1[%c0, %c0_1] : memref<512x64xbf16, #tpu.memory_space<vmem>>, vector<512x64xbf16>
    %c0_2 = arith.constant 0 : index
    %c0_3 = arith.constant 0 : index
    %4 = vector.load %arg2[%c0_2, %c0_3] : memref<64x128xbf16, #tpu.memory_space<vmem>>, vector<64x128xbf16>
    %cst = arith.constant dense<0.000000e+00> : vector<512x128xf32>
    %5 = tpu.matmul %3, %4, %cst {dimension_numbers = #tpu.dot_dimension_numbers<[1], [0], [0], [1], [0, 0, 1, 1], [], []>} : vector<512x64xbf16>, vector<64x128xbf16>, vector<512x128xf32> -> vector<512x128xf32>
    %c0_4 = arith.constant 0 : index
    %c0_5 = arith.constant 0 : index
    %6 = vector.load %arg3[%c0_4, %c0_5] : memref<1x128xf32, #tpu.memory_space<vmem>>, vector<1x128xf32>
    %7 = vector.broadcast %6 : vector<1x128xf32> to vector<512x128xf32>
    %8 = arith.subf %5, %7 : vector<512x128xf32>
    %c512_i32 = arith.constant 512 : i32
    %9 = arith.muli %arg0, %c512_i32 : i32
    %10 = tpu.iota {dimensions = array<i32: 0>} : vector<512x1xi32>
    %11 = vector.broadcast %9 : i32 to vector<512x1xi32>
    %12 = arith.addi %11, %10 : vector<512x1xi32>
    %c1024_i32 = arith.constant 1024 : i32
    %13 = vector.broadcast %c1024_i32 : i32 to vector<512x1xi32>
    %14 = arith.cmpi slt, %12, %13 : vector<512x1xi32>
    %cst_6 = arith.constant 0.000000e+00 : f32
    %15 = vector.shape_cast %14 : vector<512x1xi1> to vector<512x1xi1>
    %16 = vector.broadcast %15 : vector<512x1xi1> to vector<512x128xi1>
    %17 = vector.broadcast %cst_6 : f32 to vector<512x128xf32>
    %18 = arith.select %16, %8, %17 : vector<512x128xi1>, vector<512x128xf32>
    %c0_7 = arith.constant 0 : index
    %c0_8 = arith.constant 0 : index
    %19 = vector.load %arg4[%c0_7, %c0_8] : memref<1x128xf32, #tpu.memory_space<vmem>>, vector<1x128xf32>
    %20 = arith.mulf %18, %18 : vector<512x128xf32>
    %cst_9 = arith.constant dense<0.000000e+00> : vector<128xf32>
    %21 = vector.multi_reduction <add>, %20, %cst_9 [0] : vector<512x128xf32> to vector<128xf32>
    %22 = vector.shape_cast %21 : vector<128xf32> to vector<1x128xf32>
    %23 = arith.addf %19, %22 : vector<1x128xf32>
    %c0_10 = arith.constant 0 : index
    %c0_11 = arith.constant 0 : index
    %24 = vector.load %arg4[%c0_10, %c0_11] : memref<1x128xf32, #tpu.memory_space<vmem>>, vector<1x128xf32>
    tpu.vector_store %arg4[%c0_10, %c0_11], %23 {strides = array<i32>} : memref<1x128xf32, #tpu.memory_space<vmem>>, vector<1x128xf32>,
    return
  }
  func.func @transform_0(%arg0: i32) -> (i32, i32) {
    %c0_i32 = arith.constant 0 : i32
    %c0_i32_0 = arith.constant 0 : i32
    return %arg0, %c0_i32 : i32, i32
  }
  func.func @transform_1(%arg0: i32) -> (i32, i32) {
    %c0_i32 = arith.constant 0 : i32
    %c0_i32_0 = arith.constant 0 : i32
    %c0_i32_1 = arith.constant 0 : i32
    return %c0_i32, %c0_i32_0 : i32, i32
  }
  func.func @transform_2(%arg0: i32) -> (i32, i32) {
    %c0_i32 = arith.constant 0 : i32
    %c0_i32_0 = arith.constant 0 : i32
    %c0_i32_1 = arith.constant 0 : i32
    return %c0_i32, %c0_i32_0 : i32, i32
  }
  func.func @transform_3(%arg0: i32) -> (i32, i32) {
    %c0_i32 = arith.constant 0 : i32
    %c0_i32_0 = arith.constant 0 : i32
    %c0_i32_1 = arith.constant 0 : i32
    return %c0_i32, %c0_i32_0 : i32, i32
  }
}

module attributes {stable_mosaic.version = 11 : i64} {
  func.func @_deconv_bn_prelu_kernel(%arg0: i32, %arg1: memref<512x64xbf16, #tpu.memory_space<vmem>>, %arg2: memref<64x128xbf16, #tpu.memory_space<vmem>>, %arg3: memref<1x128xf32, #tpu.memory_space<vmem>>, %arg4: memref<1x128xf32, #tpu.memory_space<vmem>>, %arg5: memref<1x128xf32, #tpu.memory_space<vmem>>, %arg6: memref<512x128xbf16, #tpu.memory_space<vmem>>) attributes {dimension_semantics = [#tpu.dimension_semantics<parallel>], iteration_bounds = array<i64: 2>, scalar_prefetch = 0 : i64, scratch_operands = 0 : i64, tpu.core_type = #tpu.core_type<tc>, window_params = [{transform_indices = @transform_0, window_bounds = array<i64: 512, 64>}, {pipeline_mode = #tpu.pipeline_mode<synchronous>, transform_indices = @transform_1, window_bounds = array<i64: 64, 128>}, {pipeline_mode = #tpu.pipeline_mode<synchronous>, transform_indices = @transform_2, window_bounds = array<i64: 1, 128>}, {pipeline_mode = #tpu.pipeline_mode<synchronous>, transform_indices = @transform_3, window_bounds = array<i64: 1, 128>}, {pipeline_mode = #tpu.pipeline_mode<synchronous>, transform_indices = @transform_4, window_bounds = array<i64: 1, 128>}, {transform_indices = @transform_5, window_bounds = array<i64: 512, 128>}]} {
    %c0 = arith.constant 0 : index
    %c0_0 = arith.constant 0 : index
    %0 = vector.load %arg1[%c0, %c0_0] : memref<512x64xbf16, #tpu.memory_space<vmem>>, vector<512x64xbf16>
    %c0_1 = arith.constant 0 : index
    %c0_2 = arith.constant 0 : index
    %1 = vector.load %arg2[%c0_1, %c0_2] : memref<64x128xbf16, #tpu.memory_space<vmem>>, vector<64x128xbf16>
    %cst = arith.constant dense<0.000000e+00> : vector<512x128xf32>
    %2 = tpu.matmul %0, %1, %cst {dimension_numbers = #tpu.dot_dimension_numbers<[1], [0], [0], [1], [0, 0, 1, 1], [], []>} : vector<512x64xbf16>, vector<64x128xbf16>, vector<512x128xf32> -> vector<512x128xf32>
    %c0_3 = arith.constant 0 : index
    %c0_4 = arith.constant 0 : index
    %3 = vector.load %arg3[%c0_3, %c0_4] : memref<1x128xf32, #tpu.memory_space<vmem>>, vector<1x128xf32>
    %4 = vector.broadcast %3 : vector<1x128xf32> to vector<512x128xf32>
    %5 = arith.mulf %2, %4 : vector<512x128xf32>
    %c0_5 = arith.constant 0 : index
    %c0_6 = arith.constant 0 : index
    %6 = vector.load %arg4[%c0_5, %c0_6] : memref<1x128xf32, #tpu.memory_space<vmem>>, vector<1x128xf32>
    %7 = vector.broadcast %6 : vector<1x128xf32> to vector<512x128xf32>
    %8 = arith.addf %5, %7 : vector<512x128xf32>
    %cst_7 = arith.constant 0.000000e+00 : f32
    %9 = vector.broadcast %cst_7 : f32 to vector<512x128xf32>
    %10 = arith.cmpf oge, %8, %9 : vector<512x128xf32>
    %c0_8 = arith.constant 0 : index
    %c0_9 = arith.constant 0 : index
    %11 = vector.load %arg5[%c0_8, %c0_9] : memref<1x128xf32, #tpu.memory_space<vmem>>, vector<1x128xf32>
    %12 = vector.broadcast %11 : vector<1x128xf32> to vector<512x128xf32>
    %13 = arith.mulf %12, %8 : vector<512x128xf32>
    %14 = arith.select %10, %8, %13 : vector<512x128xi1>, vector<512x128xf32>
    %15 = arith.truncf %14 : vector<512x128xf32> to vector<512x128xbf16>
    %c0_10 = arith.constant 0 : index
    %c0_11 = arith.constant 0 : index
    %16 = vector.load %arg6[%c0_10, %c0_11] : memref<512x128xbf16, #tpu.memory_space<vmem>>, vector<512x128xbf16>
    tpu.vector_store %arg6[%c0_10, %c0_11], %15 {strides = array<i32>} : memref<512x128xbf16, #tpu.memory_space<vmem>>, vector<512x128xbf16>,
    return
  }
  func.func @transform_0(%arg0: i32) -> (i32, i32) {
    %c0_i32 = arith.constant 0 : i32
    %c0_i32_0 = arith.constant 0 : i32
    return %arg0, %c0_i32 : i32, i32
  }
  func.func @transform_1(%arg0: i32) -> (i32, i32) {
    %c0_i32 = arith.constant 0 : i32
    %c0_i32_0 = arith.constant 0 : i32
    %c0_i32_1 = arith.constant 0 : i32
    return %c0_i32, %c0_i32_0 : i32, i32
  }
  func.func @transform_2(%arg0: i32) -> (i32, i32) {
    %c0_i32 = arith.constant 0 : i32
    %c0_i32_0 = arith.constant 0 : i32
    %c0_i32_1 = arith.constant 0 : i32
    return %c0_i32, %c0_i32_0 : i32, i32
  }
  func.func @transform_3(%arg0: i32) -> (i32, i32) {
    %c0_i32 = arith.constant 0 : i32
    %c0_i32_0 = arith.constant 0 : i32
    %c0_i32_1 = arith.constant 0 : i32
    return %c0_i32, %c0_i32_0 : i32, i32
  }
  func.func @transform_4(%arg0: i32) -> (i32, i32) {
    %c0_i32 = arith.constant 0 : i32
    %c0_i32_0 = arith.constant 0 : i32
    %c0_i32_1 = arith.constant 0 : i32
    return %c0_i32, %c0_i32_0 : i32, i32
  }
  func.func @transform_5(%arg0: i32) -> (i32, i32) {
    %c0_i32 = arith.constant 0 : i32
    %c0_i32_0 = arith.constant 0 : i32
    return %arg0, %c0_i32 : i32, i32
  }
}

</mosaic_0001>

<llo_original>
// kernel: tile.39
$region0: #{tile.39}
  %s0 = inlined_call_operand.vmem [shape: f32[8,16], index: 0, kind: input, shape index: {}]
  %s1 = inlined_call_operand.vmem [shape: f32[1,128], index: 1, kind: output, shape index: {}]
  $region1: #{tile.39} parent=0
    #allocation0 [shape = 'u8[4096]{0}', space=vmem, size = 0x1000, scoped, tag = 'scoped mem for output reshape']
    %v2 = vld [vmem:[%s0] sm:$0x1]
    %vm3 = vcmask 130048
    %4 = vst.msk [vmem:[#allocation0] sm:$0x1] %vm3, %v2
    %s5 = scalar_lea.vmem %s0, 7
    %v6 = vld [vmem:[%s5] sm:$0x1]
    %7 = vrot.lane.b32.xlu0 %v6, 112
    %v8 = vpop.permute.xlu0 %7
    %vm9 = vcmask 1048448
    %10 = vst.msk [vmem:[#allocation0] sm:$0x1] %vm9, %v8
    %s11 = scalar_lea.vmem %s0, 6
    %v12 = vld [vmem:[%s11] sm:$0x1]
    %13 = vrot.lane.b32.xlu0 %v12, 96
    %v14 = vpop.permute.xlu0 %13
    %vm15 = vcmask 917248
    %16 = vst.msk [vmem:[#allocation0] sm:$0x1] %vm15, %v14
    %s17 = scalar_lea.vmem %s0, 5
    %v18 = vld [vmem:[%s17] sm:$0x1]
    %19 = vrot.lane.b32.xlu0 %v18, 80
    %v20 = vpop.permute.xlu0 %19
    %vm21 = vcmask 786048
    %22 = vst.msk [vmem:[#allocation0] sm:$0x1] %vm21, %v20
    %s23 = scalar_lea.vmem %s0, 4
    %v24 = vld [vmem:[%s23] sm:$0x1]
    %25 = vrot.lane.b32.xlu0 %v24, 64
    %v26 = vpop.permute.xlu0 %25
    %vm27 = vcmask 654848
    %28 = vst.msk [vmem:[#allocation0] sm:$0x1] %vm27, %v26
    %s29 = scalar_lea.vmem %s0, 3
    %v30 = vld [vmem:[%s29] sm:$0x1]
    %31 = vrot.lane.b32.xlu0 %v30, 48
    %v32 = vpop.permute.xlu0 %31
    %vm33 = vcmask 523648
    %34 = vst.msk [vmem:[#allocation0] sm:$0x1] %vm33, %v32
    %s35 = scalar_lea.vmem %s0, 2
    %v36 = vld [vmem:[%s35] sm:$0x1]
    %37 = vrot.lane.b32.xlu0 %v36, 32
    %v38 = vpop.permute.xlu0 %37
    %vm39 = vcmask 392448
    %40 = vst.msk [vmem:[#allocation0] sm:$0x1] %vm39, %v38
    %s41 = scalar_lea.vmem %s0, 1
    %v42 = vld [vmem:[%s41] sm:$0x1]
    %43 = vrot.lane.b32.xlu0 %v42, 16
    %v44 = vpop.permute.xlu0 %43
    %vm45 = vcmask 261248
    %46 = vst.msk [vmem:[#allocation0] sm:$0x1] %vm45, %v44
    %s48 = sshllo.u32 0, 1
    %v50 = vld [vmem:[#allocation0] sm:%s48]
    %s51 = sshllo.u32 0, 1
    %52 = vst [vmem:[%s1] sm:%s51] %v50

// kernel: tile.38
$region0: #{tile.38}
  #allocation2 [shape = 's32[1]{0}', space=sflag, size = 0x4, scoped, tag = 'scoped memory for tile.38']
  %s0 = inlined_call_operand.hbm [shape: f32[16], index: 0, kind: input, shape index: {}]
  %s1 = inlined_call_operand.vmem [shape: f32[8,16], index: 1, kind: output, shape index: {}]
  $region1: #{tile.38} parent=0
    #allocation0 [shape = 'u8[512]{0}', space=vmem, size = 0x400, scoped, tag = 'operand span for operand 0']
    #allocation1 [shape = 's32[1]{0}', space=sflag, size = 0x4, scoped, tag = 'scoped memory for tile.38']
    %2 = vsyncpa [#allocation1], 0
    // Predicated region
    $region2: #{tile.38} parent=1 // pred_check
      _
    $region3: #{tile.38} parent=1 // pred_check_branch
      %4 = sbr.rel (0) target = $region5
    $region4: #{tile.38} parent=1 // pred_region
      %s6 = ssub.s32 16, 16
      %7 = vsyncadd [#allocation1], %s6
      %s9 = sshll.u32 [#allocation0], 4
      %s10 = int_to_ptr.vmem [resolvable:$true] %s9
      %12 = dma.hbm_to_vmem [thread:$0]  %s0, 16, %s10, [#allocation1]
    $region5: #{tile.38} parent=1 // pred_fallthru
      _
    // Predicated region
    $region6: #{tile.38} parent=1 // pred_check
      _
    $region7: #{tile.38} parent=1 // pred_check_branch
      %14 = sbr.rel (0) target = $region9
    $region8: #{tile.38} parent=1 // pred_region
      %15 = dma.done [#allocation1], 16
    $region9: #{tile.38} parent=1 // pred_fallthru
      _
    %v16 = vld [vmem:[#allocation0] ss:$0 sm:$0xff]
    %17 = vst [vmem:[%s1] sm:$0xff] %v16
    %18 = vsyncpa [#allocation1], 1

// kernel: tile.33
$region0: #{tile.33}
  #allocation0 [shape = 's32[1]{0}', space=sflag, size = 0x4, scoped, tag = 'scoped memory for tile.33']
  %s0 = inlined_call_operand.vmem [shape: f32[16], index: 0, kind: input, shape index: {}]
  %s1 = inlined_call_operand.vmem [shape: f32[8,16], index: 1, kind: output, shape index: {}]
  // Predicated region
  $region2: #{tile.33} parent=0 // pred_check
    _
  $region3: #{tile.33} parent=0 // pred_check_branch
    %3 = sbr.rel (0) target = $region5
  $region4: #{tile.33} parent=0 // pred_region
    _
  $region5: #{tile.33} parent=0 // pred_fallthru
    _
  %v4 = vld [vmem:[%s0] ss:$0 sm:$0xff]
  %5 = vst [vmem:[%s1] sm:$0xff] %v4

// kernel: deconv_bn_prelu.2
$region0: #{deconv_bn_prelu.2}
  #allocation0 [shape = 'u32[]', space=smem, size = 0x4, offset = 0x4, fixed_abs, tag = 'smem constant byte address 0x4 - core index']
  #allocation1 [shape = 'u32[144,128]{1,0:T(1,128)}', space=vmem, size = 0x12000, scoped, tag = 'internal scratch']
  %s0 = inlined_call_operand.vmem [shape: bf16[1024,64], index: 0, kind: input, shape index: {}]
  %s1 = inlined_call_operand.vmem [shape: bf16[64,128], index: 1, kind: input, shape index: {}]
  %s2 = inlined_call_operand.vmem [shape: f32[1,128], index: 2, kind: input, shape index: {}]
  %s3 = inlined_call_operand.vmem [shape: f32[1,128], index: 3, kind: output, shape index: {}]
  %s4 = sld [smem:[#allocation0]]
  $region49: #{deconv_bn_prelu.2} parent=0
    _
  %s6 = ssub.s32 1, %s4
  %s7 = scalar_select 0, %s6, %s4
  loop: start=0, step=1, limit=4
  $region2: #{deconv_bn_prelu.2} parent=0 // loop_pre_header
    _
  $region3: #{deconv_bn_prelu.2} parent=0 // loop_header
    %s9 = sphi 0, %s13
    %p10 = scmp.ge.s32.totalorder %s9, 4
    %s19 = sphi 0, %s21
    %s22 = sphi 0, %s19
    %s23 = sphi 0, %s22
    %s39 = sphi 0, %s23
    %s43 = sphi 0, %s43
    %s45 = sphi 0, %s43
    %s46 = sphi 0, %s45
    %s60 = sphi 0, %s46
    %s64 = sphi 0, %s64
    %s66 = sphi 0, %s64
    %s67 = sphi 0, %s66
    %s81 = sphi 0, %s67
    %s85 = sphi 0, %s85
    %s87 = sphi 0, %s85
    %s88 = sphi 0, %s87
    %s102 = sphi 0, %s88
  $region4: #{deconv_bn_prelu.2} parent=0 // loop_header_branch
    %12 = sbr.rel (%p10) target = $region8
  $region5: #{deconv_bn_prelu.2} parent=0 // loop_body
    %s14 = ssub.s32 %s9, 1
    %s15 = ssub.s32 %s9, 2
    %s16 = sadd.s32 %s9, 1
    %s17 = ssub.s32 %s9, %s16
    %p18 = scmp.eq.s32.totalorder %s17, 0
    %s20 = sadd.s32 %s19, 1
    %s21 = scalar_select %p18, %s19, %s20
    %p24 = pneg %p18
    %p25 = scmp.eq.s32.totalorder %s9, 1
    %p26 = por %p24, %p25
    %p27 = scmp.ne.s32.totalorder %s19, %s22
    %p28 = scmp.eq.s32.totalorder %s9, 0
    %p29 = por %p27, %p28
    %p30 = scmp.ne.s32.totalorder %s19, %s22
    %p31 = scmp.eq.s32.totalorder %s14, 1
    %p32 = por %p30, %p31
    %p33 = scmp.ne.s32.totalorder %s22, %s23
    %p34 = scmp.eq.s32.totalorder %s14, 0
    %p35 = por %p33, %p34
    %p36 = scmp.ne.s32.totalorder %s22, %s23
    %p37 = scmp.eq.s32.totalorder %s15, 1
    %p38 = por %p36, %p37
    %p40 = scmp.ne.s32.totalorder %s23, %s39
    %p41 = scmp.eq.s32.totalorder %s15, 0
    %p42 = por %p40, %p41
    %s44 = sadd.s32 %s43, 1
    %p47 = scmp.eq.s32.totalorder %s9, 1
    %p48 = scmp.ne.s32.totalorder %s43, %s45
    %p49 = scmp.eq.s32.totalorder %s9, 0
    %p50 = por %p48, %p49
    %p51 = scmp.ne.s32.totalorder %s43, %s45
    %p52 = scmp.eq.s32.totalorder %s14, 1
    %p53 = por %p51, %p52
    %p54 = scmp.ne.s32.totalorder %s45, %s46
    %p55 = scmp.eq.s32.totalorder %s14, 0
    %p56 = por %p54, %p55
    %p57 = scmp.ne.s32.totalorder %s45, %s46
    %p58 = scmp.eq.s32.totalorder %s15, 1
    %p59 = por %p57, %p58
    %p61 = scmp.ne.s32.totalorder %s46, %s60
    %p62 = scmp.eq.s32.totalorder %s15, 0
    %p63 = por %p61, %p62
    %s65 = sadd.s32 %s64, 1
    %p68 = scmp.eq.s32.totalorder %s9, 1
    %p69 = scmp.ne.s32.totalorder %s64, %s66
    %p70 = scmp.eq.s32.totalorder %s9, 0
    %p71 = por %p69, %p70
    %p72 = scmp.ne.s32.totalorder %s64, %s66
    %p73 = scmp.eq.s32.totalorder %s14, 1
    %p74 = por %p72, %p73
    %p75 = scmp.ne.s32.totalorder %s66, %s67
    %p76 = scmp.eq.s32.totalorder %s14, 0
    %p77 = por %p75, %p76
    %p78 = scmp.ne.s32.totalorder %s66, %s67
    %p79 = scmp.eq.s32.totalorder %s15, 1
    %p80 = por %p78, %p79
    %p82 = scmp.ne.s32.totalorder %s67, %s81
    %p83 = scmp.eq.s32.totalorder %s15, 0
    %p84 = por %p82, %p83
    %s86 = sadd.s32 %s85, 1
    %p89 = scmp.eq.s32.totalorder %s9, 1
    %p90 = scmp.ne.s32.totalorder %s85, %s87
    %p91 = scmp.eq.s32.totalorder %s9, 0
    %p92 = por %p90, %p91
    %p93 = scmp.ne.s32.totalorder %s85, %s87
    %p94 = scmp.eq.s32.totalorder %s14, 1
    %p95 = por %p93, %p94
    %p96 = scmp.ne.s32.totalorder %s87, %s88
    %p97 = scmp.eq.s32.totalorder %s14, 0
    %p98 = por %p96, %p97
    %p99 = scmp.ne.s32.totalorder %s87, %s88
    %p100 = scmp.eq.s32.totalorder %s15, 1
    %p101 = por %p99, %p100
    %p103 = scmp.ne.s32.totalorder %s88, %s102
    %p104 = scmp.eq.s32.totalorder %s15, 0
    %p105 = por %p103, %p104
    %p106 = scmp.le.s32.totalorder 1, %s9
    %p107 = scmp.lt.s32.totalorder %s9, 3
    %p108 = pnand %p106, %p107
    %p109 = pneg %p108
    // Predicated region
    $region9: #{deconv_bn_prelu.2} parent=5 // pred_check
      _
    $region10: #{deconv_bn_prelu.2} parent=5 // pred_check_branch
      %111 = sbr.rel (%p108) target = $region12
    $region11: #{deconv_bn_prelu.2} parent=5 // pred_region
      %s112 = ssub.s32 %s9, 1
      // Predicated region
      $region13: #{deconv_bn_prelu.2} parent=11 // pred_check
        %p113 = pneg %p56
      $region14: #{deconv_bn_prelu.2} parent=11 // pred_check_branch
        %115 = sbr.rel (%p113) target = $region16
      $region15: #{deconv_bn_prelu.2} parent=11 // pred_region
        _
      $region16: #{deconv_bn_prelu.2} parent=11 // pred_fallthru
        _
      // Predicated region
      $region17: #{deconv_bn_prelu.2} parent=11 // pred_check
        %p116 = pneg %p77
      $region18: #{deconv_bn_prelu.2} parent=11 // pred_check_branch
        %118 = sbr.rel (%p116) target = $region20
      $region19: #{deconv_bn_prelu.2} parent=11 // pred_region
        _
      $region20: #{deconv_bn_prelu.2} parent=11 // pred_fallthru
        _
    $region12: #{deconv_bn_prelu.2} parent=5 // pred_fallthru
      _
    %p119 = scmp.lt.s32.totalorder %s9, 2
    // Predicated region
    $region21: #{deconv_bn_prelu.2} parent=5 // pred_check
      %p120 = pneg %p119
    $region22: #{deconv_bn_prelu.2} parent=5 // pred_check_branch
      %122 = sbr.rel (%p120) target = $region24
    $region23: #{deconv_bn_prelu.2} parent=5 // pred_region
      // Predicated region
      $region25: #{deconv_bn_prelu.2} parent=23 // pred_check
        %p123 = pneg %p29
      $region26: #{deconv_bn_prelu.2} parent=23 // pred_check_branch
        %125 = sbr.rel (%p123) target = $region28
      $region27: #{deconv_bn_prelu.2} parent=23 // pred_region
        %s126 = smul.u32 64, %s9
        %p127 = scmp.lt.s32.totalorder %s126, 127
        %s128 = scalar_select %p127, %s126, 127
        %s129 = smul.addr %s128, 4
        %s130 = scalar_lea.vmem %s0, %s129
        %s131 = smul.u32 64, %s9
      $region28: #{deconv_bn_prelu.2} parent=23 // pred_fallthru
        _
    $region24: #{deconv_bn_prelu.2} parent=5 // pred_fallthru
      _
    %p132 = scmp.le.s32.totalorder 1, %s9
    %p133 = scmp.lt.s32.totalorder %s9, 3
    %p134 = pnand %p132, %p133
    %p135 = pneg %p134
    // Predicated region
    $region29: #{deconv_bn_prelu.2} parent=5 // pred_check
      _
    $region30: #{deconv_bn_prelu.2} parent=5 // pred_check_branch
      %137 = sbr.rel (%p134) target = $region32
    $region31: #{deconv_bn_prelu.2} parent=5 // pred_region
      %s138 = ssub.s32 %s9, 1
      %s139 = smul.u32 64, %s14
      %p140 = scmp.lt.s32.totalorder %s139, 127
      %s141 = scalar_select %p140, %s139, 127
      %s142 = smul.addr %s141, 4
      %s143 = scalar_lea.vmem %s0, %s142
      %p144 = pneg %p35
      %p145 = pneg %p32
      %p146 = pneg %p56
      %p147 = pneg %p53
      %p148 = pneg %p77
      %p149 = pneg %p74
      %p150 = pneg %p98
      %p151 = pneg %p95
      %s152 = smul.u32 64, %s14
      %p153 = scmp.lt.s32.totalorder %s152, 127
      %s154 = scalar_select %p153, %s152, 127
      %s155 = smul.addr %s154, 4
      %s156 = scalar_lea.vmem %s0, %s155
      %s157 = smul.u32 64, %s14
      %p159 = scmp.eq.s32.totalorder %s14, 0
      // Predicated region
      $region33: #{deconv_bn_prelu.2} parent=31 // pred_check
        %p160 = pneg %p159
      $region34: #{deconv_bn_prelu.2} parent=31 // pred_check_branch
        %162 = sbr.rel (%p160) target = $region36
      $region35: #{deconv_bn_prelu.2} parent=31 // pred_region
        %163 = vst [vmem:[%s3] sm:$0x1] 0.0
      $region36: #{deconv_bn_prelu.2} parent=31 // pred_fallthru
        _
      %v164 = vld [vmem:[%s156] sm:$0xf]
      %v165 = vld [vmem:[%s156 + $0x4] sm:$0xf]
      %v166 = vld [vmem:[%s156 + $0x8] sm:$0xf]
      %v167 = vld [vmem:[%s156 + $0xc] sm:$0xf]
      %v168 = vld [vmem:[%s156 + $0x10] sm:$0xf]
      %v169 = vld [vmem:[%s156 + $0x14] sm:$0xf]
      %v170 = vld [vmem:[%s156 + $0x18] sm:$0xf]
      %v171 = vld [vmem:[%s156 + $0x1c] sm:$0xf]
      %v172 = vld [vmem:[%s156 + $0x20] sm:$0xf]
      %v173 = vld [vmem:[%s156 + $0x24] sm:$0xf]
      %v174 = vld [vmem:[%s156 + $0x28] sm:$0xf]
      %v175 = vld [vmem:[%s156 + $0x2c] sm:$0xf]
      %v176 = vld [vmem:[%s156 + $0x30] sm:$0xf]
      %v177 = vld [vmem:[%s156 + $0x34] sm:$0xf]
      %v178 = vld [vmem:[%s156 + $0x38] sm:$0xf]
      %v179 = vld [vmem:[%s156 + $0x3c] sm:$0xf]
      %v180 = vld [vmem:[%s156 + $0x40] sm:$0xf]
      %v181 = vld [vmem:[%s156 + $0x44] sm:$0xf]
      %v182 = vld [vmem:[%s156 + $0x48] sm:$0xf]
      %v183 = vld [vmem:[%s156 + $0x4c] sm:$0xf]
      %v184 = vld [vmem:[%s156 + $0x50] sm:$0xf]
      %v185 = vld [vmem:[%s156 + $0x54] sm:$0xf]
      %v186 = vld [vmem:[%s156 + $0x58] sm:$0xf]
      %v187 = vld [vmem:[%s156 + $0x5c] sm:$0xf]
      %v188 = vld [vmem:[%s156 + $0x60] sm:$0xf]
      %v189 = vld [vmem:[%s156 + $0x64] sm:$0xf]
      %v190 = vld [vmem:[%s156 + $0x68] sm:$0xf]
      %v191 = vld [vmem:[%s156 + $0x6c] sm:$0xf]
      %v192 = vld [vmem:[%s156 + $0x70] sm:$0xf]
      %v193 = vld [vmem:[%s156 + $0x74] sm:$0xf]
      %v194 = vld [vmem:[%s156 + $0x78] sm:$0xf]
      %v195 = vld [vmem:[%s156 + $0x7c] sm:$0xf]
      %v196 = vld [vmem:[%s156 + $0x80] sm:$0xf]
      %v197 = vld [vmem:[%s156 + $0x84] sm:$0xf]
      %v198 = vld [vmem:[%s156 + $0x88] sm:$0xf]
      %v199 = vld [vmem:[%s156 + $0x8c] sm:$0xf]
      %v200 = vld [vmem:[%s156 + $0x90] sm:$0xf]
      %v201 = vld [vmem:[%s156 + $0x94] sm:$0xf]
      %v202 = vld [vmem:[%s156 + $0x98] sm:$0xf]
      %v203 = vld [vmem:[%s156 + $0x9c] sm:$0xf]
      %v204 = vld [vmem:[%s156 + $0xa0] sm:$0xf]
      %v205 = vld [vmem:[%s156 + $0xa4] sm:$0xf]
      %v206 = vld [vmem:[%s156 + $0xa8] sm:$0xf]
      %v207 = vld [vmem:[%s156 + $0xac] sm:$0xf]
      %v208 = vld [vmem:[%s156 + $0xb0] sm:$0xf]
      %v209 = vld [vmem:[%s156 + $0xb4] sm:$0xf]
      %v210 = vld [vmem:[%s156 + $0xb8] sm:$0xf]
      %v211 = vld [vmem:[%s156 + $0xbc] sm:$0xf]
      %v212 = vld [vmem:[%s156 + $0xc0] sm:$0xf]
      %v213 = vld [vmem:[%s156 + $0xc4] sm:$0xf]
      %v214 = vld [vmem:[%s156 + $0xc8] sm:$0xf]
      %v215 = vld [vmem:[%s156 + $0xcc] sm:$0xf]
      %v216 = vld [vmem:[%s156 + $0xd0] sm:$0xf]
      %v217 = vld [vmem:[%s156 + $0xd4] sm:$0xf]
      %v218 = vld [vmem:[%s156 + $0xd8] sm:$0xf]
      %v219 = vld [vmem:[%s156 + $0xdc] sm:$0xf]
      %v220 = vld [vmem:[%s156 + $0xe0] sm:$0xf]
      %v221 = vld [vmem:[%s156 + $0xe4] sm:$0xf]
      %v222 = vld [vmem:[%s156 + $0xe8] sm:$0xf]
      %v223 = vld [vmem:[%s156 + $0xec] sm:$0xf]
      %v224 = vld [vmem:[%s156 + $0xf0] sm:$0xf]
      %v225 = vld [vmem:[%s156 + $0xf4] sm:$0xf]
      %v226 = vld [vmem:[%s156 + $0xf8] sm:$0xf]
      %v227 = vld [vmem:[%s156 + $0xfc] sm:$0xf]
      %v228 = vld [vmem:[%s1] sm:$0xf]
      %v229 = vld [vmem:[%s1 + $0x4] sm:$0xf]
      %v230 = vld [vmem:[%s1 + $0x8] sm:$0xf]
      %v231 = vld [vmem:[%s1 + $0xc] sm:$0xf]
      %v232 = vld [vmem:[%s1 + $0x10] sm:$0xf]
      %v233 = vld [vmem:[%s1 + $0x14] sm:$0xf]
      %v234 = vld [vmem:[%s1 + $0x18] sm:$0xf]
      %v235 = vld [vmem:[%s1 + $0x1c] sm:$0xf]
      %v300 = vunpack.c.l.b16 %v164
      %v301 = vunpack.c.l.b16 %v165
      %v302 = vunpack.c.l.b16 %v166
      %v303 = vunpack.c.l.b16 %v167
      %v304 = vunpack.c.l.b16 %v168
      %v305 = vunpack.c.l.b16 %v169
      %v306 = vunpack.c.l.b16 %v170
      %v307 = vunpack.c.l.b16 %v171
      %v308 = vunpack.c.l.b16 %v172
      %v309 = vunpack.c.l.b16 %v173
      %v310 = vunpack.c.l.b16 %v174
      %v311 = vunpack.c.l.b16 %v175
      %v312 = vunpack.c.l.b16 %v176
      %v313 = vunpack.c.l.b16 %v177
      %v314 = vunpack.c.l.b16 %v178
      %v315 = vunpack.c.l.b16 %v179
      %v316 = vunpack.c.l.b16 %v180
      %v317 = vunpack.c.l.b16 %v181
      %v318 = vunpack.c.l.b16 %v182
      %v319 = vunpack.c.l.b16 %v183
      %v320 = vunpack.c.l.b16 %v184
      %v321 = vunpack.c.l.b16 %v185
      %v322 = vunpack.c.l.b16 %v186
      %v323 = vunpack.c.l.b16 %v187
      %v324 = vunpack.c.l.b16 %v188
      %v325 = vunpack.c.l.b16 %v189
      %v326 = vunpack.c.l.b16 %v190
      %v327 = vunpack.c.l.b16 %v191
      %v328 = vunpack.c.l.b16 %v192
      %v329 = vunpack.c.l.b16 %v193
      %v330 = vunpack.c.l.b16 %v194
      %v331 = vunpack.c.l.b16 %v195
      %v332 = vunpack.c.l.b16 %v196
      %v333 = vunpack.c.l.b16 %v197
      %v334 = vunpack.c.l.b16 %v198
      %v335 = vunpack.c.l.b16 %v199
      %v336 = vunpack.c.l.b16 %v200
      %v337 = vunpack.c.l.b16 %v201
      %v338 = vunpack.c.l.b16 %v202
      %v339 = vunpack.c.l.b16 %v203
      %v340 = vunpack.c.l.b16 %v204
      %v341 = vunpack.c.l.b16 %v205
      %v342 = vunpack.c.l.b16 %v206
      %v343 = vunpack.c.l.b16 %v207
      %v344 = vunpack.c.l.b16 %v208
      %v345 = vunpack.c.l.b16 %v209
      %v346 = vunpack.c.l.b16 %v210
      %v347 = vunpack.c.l.b16 %v211
      %v348 = vunpack.c.l.b16 %v212
      %v349 = vunpack.c.l.b16 %v213
      %v350 = vunpack.c.l.b16 %v214
      %v351 = vunpack.c.l.b16 %v215
      %v352 = vunpack.c.l.b16 %v216
      %v353 = vunpack.c.l.b16 %v217
      %v354 = vunpack.c.l.b16 %v218
      %v355 = vunpack.c.l.b16 %v219
      %v356 = vunpack.c.l.b16 %v220
      %v357 = vunpack.c.l.b16 %v221
      %v358 = vunpack.c.l.b16 %v222
      %v359 = vunpack.c.l.b16 %v223
      %v360 = vunpack.c.l.b16 %v224
      %v361 = vunpack.c.l.b16 %v225
      %v362 = vunpack.c.l.b16 %v226
      %v363 = vunpack.c.l.b16 %v227
      %v364 = vpack.c.b16 %v301, %v300
      %v365 = vpack.c.b16 %v303, %v302
      %v366 = vpack.c.b16 %v305, %v304
      %v367 = vpack.c.b16 %v307, %v306
      %v368 = vpack.c.b16 %v309, %v308
      %v369 = vpack.c.b16 %v311, %v310
      %v370 = vpack.c.b16 %v313, %v312
      %v371 = vpack.c.b16 %v315, %v314
      %v372 = vpack.c.b16 %v317, %v316
      %v373 = vpack.c.b16 %v319, %v318
      %v374 = vpack.c.b16 %v321, %v320
      %v375 = vpack.c.b16 %v323, %v322
      %v376 = vpack.c.b16 %v325, %v324
      %v377 = vpack.c.b16 %v327, %v326
      %v378 = vpack.c.b16 %v329, %v328
      %v379 = vpack.c.b16 %v331, %v330
      %v380 = vpack.c.b16 %v333, %v332
      %v381 = vpack.c.b16 %v335, %v334
      %v382 = vpack.c.b16 %v337, %v336
      %v383 = vpack.c.b16 %v339, %v338
      %v384 = vpack.c.b16 %v341, %v340
      %v385 = vpack.c.b16 %v343, %v342
      %v386 = vpack.c.b16 %v345, %v344
      %v387 = vpack.c.b16 %v347, %v346
      %v388 = vpack.c.b16 %v349, %v348
      %v389 = vpack.c.b16 %v351, %v350
      %v390 = vpack.c.b16 %v353, %v352
      %v391 = vpack.c.b16 %v355, %v354
      %v392 = vpack.c.b16 %v357, %v356
      %v393 = vpack.c.b16 %v359, %v358
      %v394 = vpack.c.b16 %v361, %v360
      %v395 = vpack.c.b16 %v363, %v362
      %v404 = vunpack.c.l.b16 %v228
      %v405 = vunpack.c.l.b16 %v229
      %v406 = vunpack.c.l.b16 %v230
      %v407 = vunpack.c.l.b16 %v231
      %v408 = vunpack.c.l.b16 %v232
      %v409 = vunpack.c.l.b16 %v233
      %v410 = vunpack.c.l.b16 %v234
      %v411 = vunpack.c.l.b16 %v235
      %v412 = vpack.c.b16 %v405, %v404
      %v413 = vpack.c.b16 %v407, %v406
      %v414 = vpack.c.b16 %v409, %v408
      %v415 = vpack.c.b16 %v411, %v410
      %vm420 = vcmask 523264
      %v422 = vsel %vm420, %v364, 0
      %v425 = vsel %vm420, %v365, 0
      %v428 = vsel %vm420, %v366, 0
      %v431 = vsel %vm420, %v367, 0
      %v434 = vsel %vm420, %v368, 0
      %v437 = vsel %vm420, %v369, 0
      %v440 = vsel %vm420, %v370, 0
      %v443 = vsel %vm420, %v371, 0
      %v446 = vsel %vm420, %v372, 0
      %v449 = vsel %vm420, %v373, 0
      %v452 = vsel %vm420, %v374, 0
      %v455 = vsel %vm420, %v375, 0
      %v458 = vsel %vm420, %v376, 0
      %v461 = vsel %vm420, %v377, 0
      %v464 = vsel %vm420, %v378, 0
      %v467 = vsel %vm420, %v379, 0
      %v470 = vsel %vm420, %v380, 0
      %v473 = vsel %vm420, %v381, 0
      %v476 = vsel %vm420, %v382, 0
      %v479 = vsel %vm420, %v383, 0
      %v482 = vsel %vm420, %v384, 0
      %v485 = vsel %vm420, %v385, 0
      %v488 = vsel %vm420, %v386, 0
      %v491 = vsel %vm420, %v387, 0
      %v494 = vsel %vm420, %v388, 0
      %v497 = vsel %vm420, %v389, 0
      %v500 = vsel %vm420, %v390, 0
      %v503 = vsel %vm420, %v391, 0
      %v506 = vsel %vm420, %v392, 0
      %v509 = vsel %vm420, %v393, 0
      %v512 = vsel %vm420, %v394, 0
      %v515 = vsel %vm420, %v395, 0
      %517 = vmatprep.subr.bf16.mxu0 0
      %518 = vmatpush1.bf16.msra.mxu0 %v412
      %519 = vmatprep.subr.bf16.mxu0 0
      %520 = vmatpush1.bf16.msra.mxu0 %v413
      %521 = vmatprep.subr.bf16.mxu0 0
      %522 = vmatpush1.bf16.msra.mxu0 %v414
      %523 = vmatprep.subr.bf16.mxu0 0
      %524 = vmatpush1.bf16.msra.mxu0 %v415
      %525 = vmatprep.subr.bf16.mxu0 0
      %526 = vmatpush1.bf16.msra.mxu0 0
      %527 = vmatprep.subr.bf16.mxu0 0
      %528 = vmatpush1.bf16.msra.mxu0 0
      %529 = vmatprep.subr.bf16.mxu0 0
      %530 = vmatpush1.bf16.msra.mxu0 0
      %531 = vmatprep.subr.bf16.mxu0 0
      %532 = vmatpush1.bf16.msra.mxu0 0
      %533 = vmatprep.subr.bf16.mxu0 0
      %534 = vmatpush1.bf16.msra.mxu0 0
      %535 = vmatprep.subr.bf16.mxu0 0
      %536 = vmatpush1.bf16.msra.mxu0 0
      %537 = vmatprep.subr.bf16.mxu0 0
      %538 = vmatpush1.bf16.msra.mxu0 0
      %539 = vmatprep.subr.bf16.mxu0 0
      %540 = vmatpush1.bf16.msra.mxu0 0
      %541 = vmatprep.subr.bf16.mxu0 0
      %542 = vmatpush1.bf16.msra.mxu0 0
      %543 = vmatprep.subr.bf16.mxu0 0
      %544 = vmatpush1.bf16.msra.mxu0 0
      %545 = vmatprep.subr.bf16.mxu0 0
      %546 = vmatpush1.bf16.msra.mxu0 0
      %547 = vmatprep.subr.bf16.mxu0 0
      %548 = vmatpush1.bf16.msra.mxu0 0
      %549 = vmatprep.mubr.bf16.mxu0 0
      %550 = vmatmul.mubr.bf16.gmra.mrb[0].mxu0 %v422
      %v551 = vpop.f32.mrb[0].mxu0
      %v552 = vadd.f32 0.0, %v551
      %v553 = vpop.f32.mrb[0].mxu0
      %v554 = vpop.f32.mrb[0].mxu0
      %v555 = vadd.f32 0.0, %v554
      %v556 = vpop.f32.mrb[0].mxu0
      %557 = vmatprep.mubr.bf16.mxu0 0
      %558 = vmatmul.mubr.bf16.gmra.mrb[0].mxu0 %v425
      %v559 = vpop.f32.mrb[0].mxu0
      %v560 = vadd.f32 0.0, %v559
      %v561 = vpop.f32.mrb[0].mxu0
      %v562 = vpop.f32.mrb[0].mxu0
      %v563 = vadd.f32 0.0, %v562
      %v564 = vpop.f32.mrb[0].mxu0
      %565 = vmatprep.mubr.bf16.mxu0 0
      %566 = vmatmul.mubr.bf16.gmra.mrb[0].mxu0 %v428
      %v567 = vpop.f32.mrb[0].mxu0
      %v568 = vadd.f32 0.0, %v567
      %v569 = vpop.f32.mrb[0].mxu0
      %v570 = vpop.f32.mrb[0].mxu0
      %v571 = vadd.f32 0.0, %v570
      %v572 = vpop.f32.mrb[0].mxu0
      %573 = vmatprep.mubr.bf16.mxu0 0
      %574 = vmatmul.mubr.bf16.gmra.mrb[0].mxu0 %v431
      %v575 = vpop.f32.mrb[0].mxu0
      %v576 = vadd.f32 0.0, %v575
      %v577 = vpop.f32.mrb[0].mxu0
      %v578 = vpop.f32.mrb[0].mxu0
      %v579 = vadd.f32 0.0, %v578
      %v580 = vpop.f32.mrb[0].mxu0
      %581 = vmatprep.mubr.bf16.mxu0 0
      %582 = vmatmul.mubr.bf16.gmra.mrb[0].mxu0 %v434
      %v583 = vpop.f32.mrb[0].mxu0
      %v584 = vadd.f32 0.0, %v583
      %v585 = vpop.f32.mrb[0].mxu0
      %v586 = vpop.f32.mrb[0].mxu0
      %v587 = vadd.f32 0.0, %v586
      %v588 = vpop.f32.mrb[0].mxu0
      %589 = vmatprep.mubr.bf16.mxu0 0
      %590 = vmatmul.mubr.bf16.gmra.mrb[0].mxu0 %v437
      %v591 = vpop.f32.mrb[0].mxu0
      %v592 = vadd.f32 0.0, %v591
      %v593 = vpop.f32.mrb[0].mxu0
      %v594 = vpop.f32.mrb[0].mxu0
      %v595 = vadd.f32 0.0, %v594
      %v596 = vpop.f32.mrb[0].mxu0
      %597 = vmatprep.mubr.bf16.mxu0 0
      %598 = vmatmul.mubr.bf16.gmra.mrb[0].mxu0 %v440
      %v599 = vpop.f32.mrb[0].mxu0
      %v600 = vadd.f32 0.0, %v599
      %v601 = vpop.f32.mrb[0].mxu0
      %v602 = vpop.f32.mrb[0].mxu0
      %v603 = vadd.f32 0.0, %v602
      %v604 = vpop.f32.mrb[0].mxu0
      %605 = vmatprep.mubr.bf16.mxu0 0
      %606 = vmatmul.mubr.bf16.gmra.mrb[0].mxu0 %v443
      %v607 = vpop.f32.mrb[0].mxu0
      %v608 = vadd.f32 0.0, %v607
      %v609 = vpop.f32.mrb[0].mxu0
      %v610 = vpop.f32.mrb[0].mxu0
      %v611 = vadd.f32 0.0, %v610
      %v612 = vpop.f32.mrb[0].mxu0
      %613 = vmatprep.mubr.bf16.mxu0 0
      %614 = vmatmul.mubr.bf16.gmra.mrb[0].mxu0 %v446
      %v615 = vpop.f32.mrb[0].mxu0
      %v616 = vadd.f32 0.0, %v615
      %v617 = vpop.f32.mrb[0].mxu0
      %v618 = vpop.f32.mrb[0].mxu0
      %v619 = vadd.f32 0.0, %v618
      %v620 = vpop.f32.mrb[0].mxu0
      %621 = vmatprep.mubr.bf16.mxu0 0
      %622 = vmatmul.mubr.bf16.gmra.mrb[0].mxu0 %v449
      %v623 = vpop.f32.mrb[0].mxu0
      %v624 = vadd.f32 0.0, %v623
      %v625 = vpop.f32.mrb[0].mxu0
      %v626 = vpop.f32.mrb[0].mxu0
      %v627 = vadd.f32 0.0, %v626
      %v628 = vpop.f32.mrb[0].mxu0
      %629 = vmatprep.mubr.bf16.mxu0 0
      %630 = vmatmul.mubr.bf16.gmra.mrb[0].mxu0 %v452
      %v631 = vpop.f32.mrb[0].mxu0
      %v632 = vadd.f32 0.0, %v631
      %v633 = vpop.f32.mrb[0].mxu0
      %v634 = vpop.f32.mrb[0].mxu0
      %v635 = vadd.f32 0.0, %v634
      %v636 = vpop.f32.mrb[0].mxu0
      %637 = vmatprep.mubr.bf16.mxu0 0
      %638 = vmatmul.mubr.bf16.gmra.mrb[0].mxu0 %v455
      %v639 = vpop.f32.mrb[0].mxu0
      %v640 = vadd.f32 0.0, %v639
      %v641 = vpop.f32.mrb[0].mxu0
      %v642 = vpop.f32.mrb[0].mxu0
      %v643 = vadd.f32 0.0, %v642
      %v644 = vpop.f32.mrb[0].mxu0
      %645 = vmatprep.mubr.bf16.mxu0 0
      %646 = vmatmul.mubr.bf16.gmra.mrb[0].mxu0 %v458
      %v647 = vpop.f32.mrb[0].mxu0
      %v648 = vadd.f32 0.0, %v647
      %v649 = vpop.f32.mrb[0].mxu0
      %v650 = vpop.f32.mrb[0].mxu0
      %v651 = vadd.f32 0.0, %v650
      %v652 = vpop.f32.mrb[0].mxu0
      %653 = vmatprep.mubr.bf16.mxu0 0
      %654 = vmatmul.mubr.bf16.gmra.mrb[0].mxu0 %v461
      %v655 = vpop.f32.mrb[0].mxu0
      %v656 = vadd.f32 0.0, %v655
      %v657 = vpop.f32.mrb[0].mxu0
      %v658 = vpop.f32.mrb[0].mxu0
      %v659 = vadd.f32 0.0, %v658
      %v660 = vpop.f32.mrb[0].mxu0
      %661 = vmatprep.mubr.bf16.mxu0 0
      %662 = vmatmul.mubr.bf16.gmra.mrb[0].mxu0 %v464
      %v663 = vpop.f32.mrb[0].mxu0
      %v664 = vadd.f32 0.0, %v663
      %v665 = vpop.f32.mrb[0].mxu0
      %v666 = vpop.f32.mrb[0].mxu0
      %v667 = vadd.f32 0.0, %v666
      %v668 = vpop.f32.mrb[0].mxu0
      %669 = vmatprep.mubr.bf16.mxu0 0
      %670 = vmatmul.mubr.bf16.gmra.mrb[0].mxu0 %v467
      %v671 = vpop.f32.mrb[0].mxu0
      %v672 = vadd.f32 0.0, %v671
      %v673 = vpop.f32.mrb[0].mxu0
      %v674 = vpop.f32.mrb[0].mxu0
      %v675 = vadd.f32 0.0, %v674
      %v676 = vpop.f32.mrb[0].mxu0
      %677 = vmatprep.mubr.bf16.mxu0 0
      %678 = vmatmul.mubr.bf16.gmra.mrb[0].mxu0 %v470
      %v679 = vpop.f32.mrb[0].mxu0
      %v680 = vadd.f32 0.0, %v679
      %v681 = vpop.f32.mrb[0].mxu0
      %v682 = vpop.f32.mrb[0].mxu0
      %v683 = vadd.f32 0.0, %v682
      %v684 = vpop.f32.mrb[0].mxu0
      %685 = vmatprep.mubr.bf16.mxu0 0
      %686 = vmatmul.mubr.bf16.gmra.mrb[0].mxu0 %v473
      %v687 = vpop.f32.mrb[0].mxu0
      %v688 = vadd.f32 0.0, %v687
      %v689 = vpop.f32.mrb[0].mxu0
      %v690 = vpop.f32.mrb[0].mxu0
      %v691 = vadd.f32 0.0, %v690
      %v692 = vpop.f32.mrb[0].mxu0
      %693 = vmatprep.mubr.bf16.mxu0 0
      %694 = vmatmul.mubr.bf16.gmra.mrb[0].mxu0 %v476
      %v695 = vpop.f32.mrb[0].mxu0
      %v696 = vadd.f32 0.0, %v695
      %v697 = vpop.f32.mrb[0].mxu0
      %v698 = vpop.f32.mrb[0].mxu0
      %v699 = vadd.f32 0.0, %v698
      %v700 = vpop.f32.mrb[0].mxu0
      %701 = vmatprep.mubr.bf16.mxu0 0
      %702 = vmatmul.mubr.bf16.gmra.mrb[0].mxu0 %v479
      %v703 = vpop.f32.mrb[0].mxu0
      %v704 = vadd.f32 0.0, %v703
      %v705 = vpop.f32.mrb[0].mxu0
      %v706 = vpop.f32.mrb[0].mxu0
      %v707 = vadd.f32 0.0, %v706
      %v708 = vpop.f32.mrb[0].mxu0
      %709 = vmatprep.mubr.bf16.mxu0 0
      %710 = vmatmul.mubr.bf16.gmra.mrb[0].mxu0 %v482
      %v711 = vpop.f32.mrb[0].mxu0
      %v712 = vadd.f32 0.0, %v711
      %v713 = vpop.f32.mrb[0].mxu0
      %v714 = vpop.f32.mrb[0].mxu0
      %v715 = vadd.f32 0.0, %v714
      %v716 = vpop.f32.mrb[0].mxu0
      %717 = vmatprep.mubr.bf16.mxu0 0
      %718 = vmatmul.mubr.bf16.gmra.mrb[0].mxu0 %v485
      %v719 = vpop.f32.mrb[0].mxu0
      %v720 = vadd.f32 0.0, %v719
      %v721 = vpop.f32.mrb[0].mxu0
      %v722 = vpop.f32.mrb[0].mxu0
      %v723 = vadd.f32 0.0, %v722
      %v724 = vpop.f32.mrb[0].mxu0
      %725 = vmatprep.mubr.bf16.mxu0 0
      %726 = vmatmul.mubr.bf16.gmra.mrb[0].mxu0 %v488
      %v727 = vpop.f32.mrb[0].mxu0
      %v728 = vadd.f32 0.0, %v727
      %v729 = vpop.f32.mrb[0].mxu0
      %v730 = vpop.f32.mrb[0].mxu0
      %v731 = vadd.f32 0.0, %v730
      %v732 = vpop.f32.mrb[0].mxu0
      %733 = vmatprep.mubr.bf16.mxu0 0
      %734 = vmatmul.mubr.bf16.gmra.mrb[0].mxu0 %v491
      %v735 = vpop.f32.mrb[0].mxu0
      %v736 = vadd.f32 0.0, %v735
      %v737 = vpop.f32.mrb[0].mxu0
      %v738 = vpop.f32.mrb[0].mxu0
      %v739 = vadd.f32 0.0, %v738
      %v740 = vpop.f32.mrb[0].mxu0
      %741 = vmatprep.mubr.bf16.mxu0 0
      %742 = vmatmul.mubr.bf16.gmra.mrb[0].mxu0 %v494
      %v743 = vpop.f32.mrb[0].mxu0
      %v744 = vadd.f32 0.0, %v743
      %v745 = vpop.f32.mrb[0].mxu0
      %v746 = vpop.f32.mrb[0].mxu0
      %v747 = vadd.f32 0.0, %v746
      %v748 = vpop.f32.mrb[0].mxu0
      %749 = vmatprep.mubr.bf16.mxu0 0
      %750 = vmatmul.mubr.bf16.gmra.mrb[0].mxu0 %v497
      %v751 = vpop.f32.mrb[0].mxu0
      %v752 = vadd.f32 0.0, %v751
      %v753 = vpop.f32.mrb[0].mxu0
      %v754 = vpop.f32.mrb[0].mxu0
      %v755 = vadd.f32 0.0, %v754
      %v756 = vpop.f32.mrb[0].mxu0
      %757 = vmatprep.mubr.bf16.mxu0 0
      %758 = vmatmul.mubr.bf16.gmra.mrb[0].mxu0 %v500
      %v759 = vpop.f32.mrb[0].mxu0
      %v760 = vadd.f32 0.0, %v759
      %v761 = vpop.f32.mrb[0].mxu0
      %v762 = vpop.f32.mrb[0].mxu0
      %v763 = vadd.f32 0.0, %v762
      %v764 = vpop.f32.mrb[0].mxu0
      %765 = vmatprep.mubr.bf16.mxu0 0
      %766 = vmatmul.mubr.bf16.gmra.mrb[0].mxu0 %v503
      %v767 = vpop.f32.mrb[0].mxu0
      %v768 = vadd.f32 0.0, %v767
      %v769 = vpop.f32.mrb[0].mxu0
      %v770 = vpop.f32.mrb[0].mxu0
      %v771 = vadd.f32 0.0, %v770
      %v772 = vpop.f32.mrb[0].mxu0
      %773 = vmatprep.mubr.bf16.mxu0 0
      %774 = vmatmul.mubr.bf16.gmra.mrb[0].mxu0 %v506
      %v775 = vpop.f32.mrb[0].mxu0
      %v776 = vadd.f32 0.0, %v775
      %v777 = vpop.f32.mrb[0].mxu0
      %v778 = vpop.f32.mrb[0].mxu0
      %v779 = vadd.f32 0.0, %v778
      %v780 = vpop.f32.mrb[0].mxu0
      %781 = vmatprep.mubr.bf16.mxu0 0
      %782 = vmatmul.mubr.bf16.gmra.mrb[0].mxu0 %v509
      %v783 = vpop.f32.mrb[0].mxu0
      %v784 = vadd.f32 0.0, %v783
      %v785 = vpop.f32.mrb[0].mxu0
      %v786 = vpop.f32.mrb[0].mxu0
      %v787 = vadd.f32 0.0, %v786
      %v788 = vpop.f32.mrb[0].mxu0
      %789 = vmatprep.mubr.bf16.mxu0 0
      %790 = vmatmul.mubr.bf16.gmra.mrb[0].mxu0 %v512
      %v791 = vpop.f32.mrb[0].mxu0
      %v792 = vadd.f32 0.0, %v791
      %v793 = vpop.f32.mrb[0].mxu0
      %v794 = vpop.f32.mrb[0].mxu0
      %v795 = vadd.f32 0.0, %v794
      %v796 = vpop.f32.mrb[0].mxu0
      %797 = vmatprep.mubr.bf16.mxu0 0
      %798 = vmatmul.mubr.bf16.gmra.mrb[0].mxu0 %v515
      %v799 = vpop.f32.mrb[0].mxu0
      %v800 = vadd.f32 0.0, %v799
      %v801 = vpop.f32.mrb[0].mxu0
      %v802 = vpop.f32.mrb[0].mxu0
      %v803 = vadd.f32 0.0, %v802
      %v804 = vpop.f32.mrb[0].mxu0
      %805 = vdwg.mxu0
      %v806 = vld [vmem:[%s2] sm:$0x1]
      %v808 = vlaneseq
      %v809 = vshrl.u32 %v808, 7
      %v810 = vsub.s32 0, %v809
      %v811 = vrot.slane %v806, %v810
      %v813 = vsub.f32 %v552, %v811
      %v814 = vsub.f32 %v555, %v811
      %v815 = vsub.f32 %v560, %v811
      %v816 = vsub.f32 %v563, %v811
      %v817 = vsub.f32 %v568, %v811
      %v818 = vsub.f32 %v571, %v811
      %v819 = vsub.f32 %v576, %v811
      %v820 = vsub.f32 %v579, %v811
      %v821 = vsub.f32 %v584, %v811
      %v822 = vsub.f32 %v587, %v811
      %v823 = vsub.f32 %v592, %v811
      %v824 = vsub.f32 %v595, %v811
      %v825 = vsub.f32 %v600, %v811
      %v826 = vsub.f32 %v603, %v811
      %v827 = vsub.f32 %v608, %v811
      %v828 = vsub.f32 %v611, %v811
      %v829 = vsub.f32 %v616, %v811
      %v830 = vsub.f32 %v619, %v811
      %v831 = vsub.f32 %v624, %v811
      %v832 = vsub.f32 %v627, %v811
      %v833 = vsub.f32 %v632, %v811
      %v834 = vsub.f32 %v635, %v811
      %v835 = vsub.f32 %v640, %v811
      %v836 = vsub.f32 %v643, %v811
      %v837 = vsub.f32 %v648, %v811
      %v838 = vsub.f32 %v651, %v811
      %v839 = vsub.f32 %v656, %v811
      %v840 = vsub.f32 %v659, %v811
      %v841 = vsub.f32 %v664, %v811
      %v842 = vsub.f32 %v667, %v811
      %v843 = vsub.f32 %v672, %v811
      %v844 = vsub.f32 %v675, %v811
      %v845 = vsub.f32 %v680, %v811
      %v846 = vsub.f32 %v683, %v811
      %v847 = vsub.f32 %v688, %v811
      %v848 = vsub.f32 %v691, %v811
      %v849 = vsub.f32 %v696, %v811
      %v850 = vsub.f32 %v699, %v811
      %v851 = vsub.f32 %v704, %v811
      %v852 = vsub.f32 %v707, %v811
      %v853 = vsub.f32 %v712, %v811
      %v854 = vsub.f32 %v715, %v811
      %v855 = vsub.f32 %v720, %v811
      %v856 = vsub.f32 %v723, %v811
      %v857 = vsub.f32 %v728, %v811
      %v858 = vsub.f32 %v731, %v811
      %v859 = vsub.f32 %v736, %v811
      %v860 = vsub.f32 %v739, %v811
      %v861 = vsub.f32 %v744, %v811
      %v862 = vsub.f32 %v747, %v811
      %v863 = vsub.f32 %v752, %v811
      %v864 = vsub.f32 %v755, %v811
      %v865 = vsub.f32 %v760, %v811
      %v866 = vsub.f32 %v763, %v811
      %v867 = vsub.f32 %v768, %v811
      %v868 = vsub.f32 %v771, %v811
      %v869 = vsub.f32 %v776, %v811
      %v870 = vsub.f32 %v779, %v811
      %v871 = vsub.f32 %v784, %v811
      %v872 = vsub.f32 %v787, %v811
      %v873 = vsub.f32 %v792, %v811
      %v874 = vsub.f32 %v795, %v811
      %v875 = vsub.f32 %v800, %v811
      %v876 = vsub.f32 %v803, %v811
      %s877 = smul.u32 %s14, 512
      %v878 = vlaneseq
      %v879 = vshrl.u32 %v878, 7
      %v880 = vadd.s32 %v879, 8
      %v881 = vadd.s32 %v879, 16
      %v882 = vadd.s32 %v879, 24
      %v883 = vadd.s32 %v879, 32
      %v884 = vadd.s32 %v879, 40
      %v885 = vadd.s32 %v879, 48
      %v886 = vadd.s32 %v879, 56
      %v887 = vadd.s32 %v879, 64
      %v888 = vadd.s32 %v879, 72
      %v889 = vadd.s32 %v879, 80
      %v890 = vadd.s32 %v879, 88
      %v891 = vadd.s32 %v879, 96
      %v892 = vadd.s32 %v879, 104
      %v893 = vadd.s32 %v879, 112
      %v894 = vadd.s32 %v879, 120
      %v895 = vadd.s32 %v879, 128
      %v896 = vadd.s32 %v879, 136
      %v897 = vadd.s32 %v879, 144
      %v898 = vadd.s32 %v879, 152
      %v899 = vadd.s32 %v879, 160
      %v900 = vadd.s32 %v879, 168
      %v901 = vadd.s32 %v879, 176
      %v902 = vadd.s32 %v879, 184
      %v903 = vadd.s32 %v879, 192
      %v904 = vadd.s32 %v879, 200
      %v905 = vadd.s32 %v879, 208
      %v906 = vadd.s32 %v879, 216
      %v907 = vadd.s32 %v879, 224
      %v908 = vadd.s32 %v879, 232
      %v909 = vadd.s32 %v879, 240
      %v910 = vadd.s32 %v879, 248
      %v911 = vadd.s32 %v879, 256
      %v912 = vadd.s32 %v879, 264
      %v913 = vadd.s32 %v879, 272
      %v914 = vadd.s32 %v879, 280
      %v915 = vadd.s32 %v879, 288
      %v916 = vadd.s32 %v879, 296
      %v917 = vadd.s32 %v879, 304
      %v918 = vadd.s32 %v879, 312
      %v919 = vadd.s32 %v879, 320
      %v920 = vadd.s32 %v879, 328
      %v921 = vadd.s32 %v879, 336
      %v922 = vadd.s32 %v879, 344
      %v923 = vadd.s32 %v879, 352
      %v924 = vadd.s32 %v879, 360
      %v925 = vadd.s32 %v879, 368
      %v926 = vadd.s32 %v879, 376
      %v927 = vadd.s32 %v879, 384
      %v928 = vadd.s32 %v879, 392
      %v929 = vadd.s32 %v879, 400
      %v930 = vadd.s32 %v879, 408
      %v931 = vadd.s32 %v879, 416
      %v932 = vadd.s32 %v879, 424
      %v933 = vadd.s32 %v879, 432
      %v934 = vadd.s32 %v879, 440
      %v935 = vadd.s32 %v879, 448
      %v936 = vadd.s32 %v879, 456
      %v937 = vadd.s32 %v879, 464
      %v938 = vadd.s32 %v879, 472
      %v939 = vadd.s32 %v879, 480
      %v940 = vadd.s32 %v879, 488
      %v941 = vadd.s32 %v879, 496
      %v942 = vadd.s32 %v879, 504
      %v943 = vstv %s877
      %v944 = vadd.s32 %v943, %v879
      %v945 = vadd.s32 %v943, %v880
      %v946 = vadd.s32 %v943, %v881
      %v947 = vadd.s32 %v943, %v882
      %v948 = vadd.s32 %v943, %v883
      %v949 = vadd.s32 %v943, %v884
      %v950 = vadd.s32 %v943, %v885
      %v951 = vadd.s32 %v943, %v886
      %v952 = vadd.s32 %v943, %v887
      %v953 = vadd.s32 %v943, %v888
      %v954 = vadd.s32 %v943, %v889
      %v955 = vadd.s32 %v943, %v890
      %v956 = vadd.s32 %v943, %v891
      %v957 = vadd.s32 %v943, %v892
      %v958 = vadd.s32 %v943, %v893
      %v959 = vadd.s32 %v943, %v894
      %v960 = vadd.s32 %v943, %v895
      %v961 = vadd.s32 %v943, %v896
      %v962 = vadd.s32 %v943, %v897
      %v963 = vadd.s32 %v943, %v898
      %v964 = vadd.s32 %v943, %v899
      %v965 = vadd.s32 %v943, %v900
      %v966 = vadd.s32 %v943, %v901
      %v967 = vadd.s32 %v943, %v902
      %v968 = vadd.s32 %v943, %v903
      %v969 = vadd.s32 %v943, %v904
      %v970 = vadd.s32 %v943, %v905
      %v971 = vadd.s32 %v943, %v906
      %v972 = vadd.s32 %v943, %v907
      %v973 = vadd.s32 %v943, %v908
      %v974 = vadd.s32 %v943, %v909
      %v975 = vadd.s32 %v943, %v910
      %v976 = vadd.s32 %v943, %v911
      %v977 = vadd.s32 %v943, %v912
      %v978 = vadd.s32 %v943, %v913
      %v979 = vadd.s32 %v943, %v914
      %v980 = vadd.s32 %v943, %v915
      %v981 = vadd.s32 %v943, %v916
      %v982 = vadd.s32 %v943, %v917
      %v983 = vadd.s32 %v943, %v918
      %v984 = vadd.s32 %v943, %v919
      %v985 = vadd.s32 %v943, %v920
      %v986 = vadd.s32 %v943, %v921
      %v987 = vadd.s32 %v943, %v922
      %v988 = vadd.s32 %v943, %v923
      %v989 = vadd.s32 %v943, %v924
      %v990 = vadd.s32 %v943, %v925
      %v991 = vadd.s32 %v943, %v926
      %v992 = vadd.s32 %v943, %v927
      %v993 = vadd.s32 %v943, %v928
      %v994 = vadd.s32 %v943, %v929
      %v995 = vadd.s32 %v943, %v930
      %v996 = vadd.s32 %v943, %v931
      %v997 = vadd.s32 %v943, %v932
      %v998 = vadd.s32 %v943, %v933
      %v999 = vadd.s32 %v943, %v934
      %v1000 = vadd.s32 %v943, %v935
      %v1001 = vadd.s32 %v943, %v936
      %v1002 = vadd.s32 %v943, %v937
      %v1003 = vadd.s32 %v943, %v938
      %v1004 = vadd.s32 %v943, %v939
      %v1005 = vadd.s32 %v943, %v940
      %v1006 = vadd.s32 %v943, %v941
      %v1007 = vadd.s32 %v943, %v942
      %vm1008 = vcmp.lt.s32.totalorder %v944, 1024
      %vm1009 = vcmp.lt.s32.totalorder %v945, 1024
      %vm1010 = vcmp.lt.s32.totalorder %v946, 1024
      %vm1011 = vcmp.lt.s32.totalorder %v947, 1024
      %vm1012 = vcmp.lt.s32.totalorder %v948, 1024
      %vm1013 = vcmp.lt.s32.totalorder %v949, 1024
      %vm1014 = vcmp.lt.s32.totalorder %v950, 1024
      %vm1015 = vcmp.lt.s32.totalorder %v951, 1024
      %vm1016 = vcmp.lt.s32.totalorder %v952, 1024
      %vm1017 = vcmp.lt.s32.totalorder %v953, 1024
      %vm1018 = vcmp.lt.s32.totalorder %v954, 1024
      %vm1019 = vcmp.lt.s32.totalorder %v955, 1024
      %vm1020 = vcmp.lt.s32.totalorder %v956, 1024
      %vm1021 = vcmp.lt.s32.totalorder %v957, 1024
      %vm1022 = vcmp.lt.s32.totalorder %v958, 1024
      %vm1023 = vcmp.lt.s32.totalorder %v959, 1024
      %vm1024 = vcmp.lt.s32.totalorder %v960, 1024
      %vm1025 = vcmp.lt.s32.totalorder %v961, 1024
      %vm1026 = vcmp.lt.s32.totalorder %v962, 1024
      %vm1027 = vcmp.lt.s32.totalorder %v963, 1024
      %vm1028 = vcmp.lt.s32.totalorder %v964, 1024
      %vm1029 = vcmp.lt.s32.totalorder %v965, 1024
      %vm1030 = vcmp.lt.s32.totalorder %v966, 1024
      %vm1031 = vcmp.lt.s32.totalorder %v967, 1024
      %vm1032 = vcmp.lt.s32.totalorder %v968, 1024
      %vm1033 = vcmp.lt.s32.totalorder %v969, 1024
      %vm1034 = vcmp.lt.s32.totalorder %v970, 1024
      %vm1035 = vcmp.lt.s32.totalorder %v971, 1024
      %vm1036 = vcmp.lt.s32.totalorder %v972, 1024
      %vm1037 = vcmp.lt.s32.totalorder %v973, 1024
      %vm1038 = vcmp.lt.s32.totalorder %v974, 1024
      %vm1039 = vcmp.lt.s32.totalorder %v975, 1024
      %vm1040 = vcmp.lt.s32.totalorder %v976, 1024
      %vm1041 = vcmp.lt.s32.totalorder %v977, 1024
      %vm1042 = vcmp.lt.s32.totalorder %v978, 1024
      %vm1043 = vcmp.lt.s32.totalorder %v979, 1024
      %vm1044 = vcmp.lt.s32.totalorder %v980, 1024
      %vm1045 = vcmp.lt.s32.totalorder %v981, 1024
      %vm1046 = vcmp.lt.s32.totalorder %v982, 1024
      %vm1047 = vcmp.lt.s32.totalorder %v983, 1024
      %vm1048 = vcmp.lt.s32.totalorder %v984, 1024
      %vm1049 = vcmp.lt.s32.totalorder %v985, 1024
      %vm1050 = vcmp.lt.s32.totalorder %v986, 1024
      %vm1051 = vcmp.lt.s32.totalorder %v987, 1024
      %vm1052 = vcmp.lt.s32.totalorder %v988, 1024
      %vm1053 = vcmp.lt.s32.totalorder %v989, 1024
      %vm1054 = vcmp.lt.s32.totalorder %v990, 1024
      %vm1055 = vcmp.lt.s32.totalorder %v991, 1024
      %vm1056 = vcmp.lt.s32.totalorder %v992, 1024
      %vm1057 = vcmp.lt.s32.totalorder %v993, 1024
      %vm1058 = vcmp.lt.s32.totalorder %v994, 1024
      %vm1059 = vcmp.lt.s32.totalorder %v995, 1024
      %vm1060 = vcmp.lt.s32.totalorder %v996, 1024
      %vm1061 = vcmp.lt.s32.totalorder %v997, 1024
      %vm1062 = vcmp.lt.s32.totalorder %v998, 1024
      %vm1063 = vcmp.lt.s32.totalorder %v999, 1024
      %vm1064 = vcmp.lt.s32.totalorder %v1000, 1024
      %vm1065 = vcmp.lt.s32.totalorder %v1001, 1024
      %vm1066 = vcmp.lt.s32.totalorder %v1002, 1024
      %vm1067 = vcmp.lt.s32.totalorder %v1003, 1024
      %vm1068 = vcmp.lt.s32.totalorder %v1004, 1024
      %vm1069 = vcmp.lt.s32.totalorder %v1005, 1024
      %vm1070 = vcmp.lt.s32.totalorder %v1006, 1024
      %vm1071 = vcmp.lt.s32.totalorder %v1007, 1024
      %v1072 = vsel %vm1008, 1, 0
      %v1073 = vsel %vm1009, 1, 0
      %v1074 = vsel %vm1010, 1, 0
      %v1075 = vsel %vm1011, 1, 0
      %v1076 = vsel %vm1012, 1, 0
      %v1077 = vsel %vm1013, 1, 0
      %v1078 = vsel %vm1014, 1, 0
      %v1079 = vsel %vm1015, 1, 0
      %v1080 = vsel %vm1016, 1, 0
      %v1081 = vsel %vm1017, 1, 0
      %v1082 = vsel %vm1018, 1, 0
      %v1083 = vsel %vm1019, 1, 0
      %v1084 = vsel %vm1020, 1, 0
      %v1085 = vsel %vm1021, 1, 0
      %v1086 = vsel %vm1022, 1, 0
      %v1087 = vsel %vm1023, 1, 0
      %v1088 = vsel %vm1024, 1, 0
      %v1089 = vsel %vm1025, 1, 0
      %v1090 = vsel %vm1026, 1, 0
      %v1091 = vsel %vm1027, 1, 0
      %v1092 = vsel %vm1028, 1, 0
      %v1093 = vsel %vm1029, 1, 0
      %v1094 = vsel %vm1030, 1, 0
      %v1095 = vsel %vm1031, 1, 0
      %v1096 = vsel %vm1032, 1, 0
      %v1097 = vsel %vm1033, 1, 0
      %v1098 = vsel %vm1034, 1, 0
      %v1099 = vsel %vm1035, 1, 0
      %v1100 = vsel %vm1036, 1, 0
      %v1101 = vsel %vm1037, 1, 0
      %v1102 = vsel %vm1038, 1, 0
      %v1103 = vsel %vm1039, 1, 0
      %v1104 = vsel %vm1040, 1, 0
      %v1105 = vsel %vm1041, 1, 0
      %v1106 = vsel %vm1042, 1, 0
      %v1107 = vsel %vm1043, 1, 0
      %v1108 = vsel %vm1044, 1, 0
      %v1109 = vsel %vm1045, 1, 0
      %v1110 = vsel %vm1046, 1, 0
      %v1111 = vsel %vm1047, 1, 0
      %v1112 = vsel %vm1048, 1, 0
      %v1113 = vsel %vm1049, 1, 0
      %v1114 = vsel %vm1050, 1, 0
      %v1115 = vsel %vm1051, 1, 0
      %v1116 = vsel %vm1052, 1, 0
      %v1117 = vsel %vm1053, 1, 0
      %v1118 = vsel %vm1054, 1, 0
      %v1119 = vsel %vm1055, 1, 0
      %v1120 = vsel %vm1056, 1, 0
      %v1121 = vsel %vm1057, 1, 0
      %v1122 = vsel %vm1058, 1, 0
      %v1123 = vsel %vm1059, 1, 0
      %v1124 = vsel %vm1060, 1, 0
      %v1125 = vsel %vm1061, 1, 0
      %v1126 = vsel %vm1062, 1, 0
      %v1127 = vsel %vm1063, 1, 0
      %v1128 = vsel %vm1064, 1, 0
      %v1129 = vsel %vm1065, 1, 0
      %v1130 = vsel %vm1066, 1, 0
      %v1131 = vsel %vm1067, 1, 0
      %v1132 = vsel %vm1068, 1, 0
      %v1133 = vsel %vm1069, 1, 0
      %v1134 = vsel %vm1070, 1, 0
      %v1135 = vsel %vm1071, 1, 0
      %vm1136 = vcmp.eq.s32.totalorder %v1072, 1
      %vm1137 = vcmp.eq.s32.totalorder %v1073, 1
      %vm1138 = vcmp.eq.s32.totalorder %v1074, 1
      %vm1139 = vcmp.eq.s32.totalorder %v1075, 1
      %vm1140 = vcmp.eq.s32.totalorder %v1076, 1
      %vm1141 = vcmp.eq.s32.totalorder %v1077, 1
      %vm1142 = vcmp.eq.s32.totalorder %v1078, 1
      %vm1143 = vcmp.eq.s32.totalorder %v1079, 1
      %vm1144 = vcmp.eq.s32.totalorder %v1080, 1
      %vm1145 = vcmp.eq.s32.totalorder %v1081, 1
      %vm1146 = vcmp.eq.s32.totalorder %v1082, 1
      %vm1147 = vcmp.eq.s32.totalorder %v1083, 1
      %vm1148 = vcmp.eq.s32.totalorder %v1084, 1
      %vm1149 = vcmp.eq.s32.totalorder %v1085, 1
      %vm1150 = vcmp.eq.s32.totalorder %v1086, 1
      %vm1151 = vcmp.eq.s32.totalorder %v1087, 1
      %vm1152 = vcmp.eq.s32.totalorder %v1088, 1
      %vm1153 = vcmp.eq.s32.totalorder %v1089, 1
      %vm1154 = vcmp.eq.s32.totalorder %v1090, 1
      %vm1155 = vcmp.eq.s32.totalorder %v1091, 1
      %vm1156 = vcmp.eq.s32.totalorder %v1092, 1
      %vm1157 = vcmp.eq.s32.totalorder %v1093, 1
      %vm1158 = vcmp.eq.s32.totalorder %v1094, 1
      %vm1159 = vcmp.eq.s32.totalorder %v1095, 1
      %vm1160 = vcmp.eq.s32.totalorder %v1096, 1
      %vm1161 = vcmp.eq.s32.totalorder %v1097, 1
      %vm1162 = vcmp.eq.s32.totalorder %v1098, 1
      %vm1163 = vcmp.eq.s32.totalorder %v1099, 1
      %vm1164 = vcmp.eq.s32.totalorder %v1100, 1
      %vm1165 = vcmp.eq.s32.totalorder %v1101, 1
      %vm1166 = vcmp.eq.s32.totalorder %v1102, 1
      %vm1167 = vcmp.eq.s32.totalorder %v1103, 1
      %vm1168 = vcmp.eq.s32.totalorder %v1104, 1
      %vm1169 = vcmp.eq.s32.totalorder %v1105, 1
      %vm1170 = vcmp.eq.s32.totalorder %v1106, 1
      %vm1171 = vcmp.eq.s32.totalorder %v1107, 1
      %vm1172 = vcmp.eq.s32.totalorder %v1108, 1
      %vm1173 = vcmp.eq.s32.totalorder %v1109, 1
      %vm1174 = vcmp.eq.s32.totalorder %v1110, 1
      %vm1175 = vcmp.eq.s32.totalorder %v1111, 1
      %vm1176 = vcmp.eq.s32.totalorder %v1112, 1
      %vm1177 = vcmp.eq.s32.totalorder %v1113, 1
      %vm1178 = vcmp.eq.s32.totalorder %v1114, 1
      %vm1179 = vcmp.eq.s32.totalorder %v1115, 1
      %vm1180 = vcmp.eq.s32.totalorder %v1116, 1
      %vm1181 = vcmp.eq.s32.totalorder %v1117, 1
      %vm1182 = vcmp.eq.s32.totalorder %v1118, 1
      %vm1183 = vcmp.eq.s32.totalorder %v1119, 1
      %vm1184 = vcmp.eq.s32.totalorder %v1120, 1
      %vm1185 = vcmp.eq.s32.totalorder %v1121, 1
      %vm1186 = vcmp.eq.s32.totalorder %v1122, 1
      %vm1187 = vcmp.eq.s32.totalorder %v1123, 1
      %vm1188 = vcmp.eq.s32.totalorder %v1124, 1
      %vm1189 = vcmp.eq.s32.totalorder %v1125, 1
      %vm1190 = vcmp.eq.s32.totalorder %v1126, 1
      %vm1191 = vcmp.eq.s32.totalorder %v1127, 1
      %vm1192 = vcmp.eq.s32.totalorder %v1128, 1
      %vm1193 = vcmp.eq.s32.totalorder %v1129, 1
      %vm1194 = vcmp.eq.s32.totalorder %v1130, 1
      %vm1195 = vcmp.eq.s32.totalorder %v1131, 1
      %vm1196 = vcmp.eq.s32.totalorder %v1132, 1
      %vm1197 = vcmp.eq.s32.totalorder %v1133, 1
      %vm1198 = vcmp.eq.s32.totalorder %v1134, 1
      %vm1199 = vcmp.eq.s32.totalorder %v1135, 1
      %v1200 = vsel %vm1136, %v813, 0.0
      %v1201 = vsel %vm1137, %v814, 0.0
      %v1202 = vsel %vm1138, %v815, 0.0
      %v1203 = vsel %vm1139, %v816, 0.0
      %v1204 = vsel %vm1140, %v817, 0.0
      %v1205 = vsel %vm1141, %v818, 0.0
      %v1206 = vsel %vm1142, %v819, 0.0
      %v1207 = vsel %vm1143, %v820, 0.0
      %v1208 = vsel %vm1144, %v821, 0.0
      %v1209 = vsel %vm1145, %v822, 0.0
      %v1210 = vsel %vm1146, %v823, 0.0
      %v1211 = vsel %vm1147, %v824, 0.0
      %v1212 = vsel %vm1148, %v825, 0.0
      %v1213 = vsel %vm1149, %v826, 0.0
      %v1214 = vsel %vm1150, %v827, 0.0
      %v1215 = vsel %vm1151, %v828, 0.0
      %v1216 = vsel %vm1152, %v829, 0.0
      %v1217 = vsel %vm1153, %v830, 0.0
      %v1218 = vsel %vm1154, %v831, 0.0
      %v1219 = vsel %vm1155, %v832, 0.0
      %v1220 = vsel %vm1156, %v833, 0.0
      %v1221 = vsel %vm1157, %v834, 0.0
      %v1222 = vsel %vm1158, %v835, 0.0
      %v1223 = vsel %vm1159, %v836, 0.0
      %v1224 = vsel %vm1160, %v837, 0.0
      %v1225 = vsel %vm1161, %v838, 0.0
      %v1226 = vsel %vm1162, %v839, 0.0
      %v1227 = vsel %vm1163, %v840, 0.0
      %v1228 = vsel %vm1164, %v841, 0.0
      %v1229 = vsel %vm1165, %v842, 0.0
      %v1230 = vsel %vm1166, %v843, 0.0
      %v1231 = vsel %vm1167, %v844, 0.0
      %v1232 = vsel %vm1168, %v845, 0.0
      %v1233 = vsel %vm1169, %v846, 0.0
      %v1234 = vsel %vm1170, %v847, 0.0
      %v1235 = vsel %vm1171, %v848, 0.0
      %v1236 = vsel %vm1172, %v849, 0.0
      %v1237 = vsel %vm1173, %v850, 0.0
      %v1238 = vsel %vm1174, %v851, 0.0
      %v1239 = vsel %vm1175, %v852, 0.0
      %v1240 = vsel %vm1176, %v853, 0.0
      %v1241 = vsel %vm1177, %v854, 0.0
      %v1242 = vsel %vm1178, %v855, 0.0
      %v1243 = vsel %vm1179, %v856, 0.0
      %v1244 = vsel %vm1180, %v857, 0.0
      %v1245 = vsel %vm1181, %v858, 0.0
      %v1246 = vsel %vm1182, %v859, 0.0
      %v1247 = vsel %vm1183, %v860, 0.0
      %v1248 = vsel %vm1184, %v861, 0.0
      %v1249 = vsel %vm1185, %v862, 0.0
      %v1250 = vsel %vm1186, %v863, 0.0
      %v1251 = vsel %vm1187, %v864, 0.0
      %v1252 = vsel %vm1188, %v865, 0.0
      %v1253 = vsel %vm1189, %v866, 0.0
      %v1254 = vsel %vm1190, %v867, 0.0
      %v1255 = vsel %vm1191, %v868, 0.0
      %v1256 = vsel %vm1192, %v869, 0.0
      %v1257 = vsel %vm1193, %v870, 0.0
      %v1258 = vsel %vm1194, %v871, 0.0
      %v1259 = vsel %vm1195, %v872, 0.0
      %v1260 = vsel %vm1196, %v873, 0.0
      %v1261 = vsel %vm1197, %v874, 0.0
      %v1262 = vsel %vm1198, %v875, 0.0
      %v1263 = vsel %vm1199, %v876, 0.0
      %v1264 = vld [vmem:[%s3] sm:$0x1]
      %v1265 = vmul.f32 %v1200, %v1200
      %v1266 = vmul.f32 %v1201, %v1201
      %v1267 = vmul.f32 %v1202, %v1202
      %v1268 = vmul.f32 %v1203, %v1203
      %v1269 = vmul.f32 %v1204, %v1204
      %v1270 = vmul.f32 %v1205, %v1205
      %v1271 = vmul.f32 %v1206, %v1206
      %v1272 = vmul.f32 %v1207, %v1207
      %v1273 = vmul.f32 %v1208, %v1208
      %v1274 = vmul.f32 %v1209, %v1209
      %v1275 = vmul.f32 %v1210, %v1210
      %v1276 = vmul.f32 %v1211, %v1211
      %v1277 = vmul.f32 %v1212, %v1212
      %v1278 = vmul.f32 %v1213, %v1213
      %v1279 = vmul.f32 %v1214, %v1214
      %v1280 = vmul.f32 %v1215, %v1215
      %v1281 = vmul.f32 %v1216, %v1216
      %v1282 = vmul.f32 %v1217, %v1217
      %v1283 = vmul.f32 %v1218, %v1218
      %v1284 = vmul.f32 %v1219, %v1219
      %v1285 = vmul.f32 %v1220, %v1220
      %v1286 = vmul.f32 %v1221, %v1221
      %v1287 = vmul.f32 %v1222, %v1222
      %v1288 = vmul.f32 %v1223, %v1223
      %v1289 = vmul.f32 %v1224, %v1224
      %v1290 = vmul.f32 %v1225, %v1225
      %v1291 = vmul.f32 %v1226, %v1226
      %v1292 = vmul.f32 %v1227, %v1227
      %v1293 = vmul.f32 %v1228, %v1228
      %v1294 = vmul.f32 %v1229, %v1229
      %v1295 = vmul.f32 %v1230, %v1230
      %v1296 = vmul.f32 %v1231, %v1231
      %v1297 = vmul.f32 %v1232, %v1232
      %v1298 = vmul.f32 %v1233, %v1233
      %v1299 = vmul.f32 %v1234, %v1234
      %v1300 = vmul.f32 %v1235, %v1235
      %v1301 = vmul.f32 %v1236, %v1236
      %v1302 = vmul.f32 %v1237, %v1237
      %v1303 = vmul.f32 %v1238, %v1238
      %v1304 = vmul.f32 %v1239, %v1239
      %v1305 = vmul.f32 %v1240, %v1240
      %v1306 = vmul.f32 %v1241, %v1241
      %v1307 = vmul.f32 %v1242, %v1242
      %v1308 = vmul.f32 %v1243, %v1243
      %v1309 = vmul.f32 %v1244, %v1244
      %v1310 = vmul.f32 %v1245, %v1245
      %v1311 = vmul.f32 %v1246, %v1246
      %v1312 = vmul.f32 %v1247, %v1247
      %v1313 = vmul.f32 %v1248, %v1248
      %v1314 = vmul.f32 %v1249, %v1249
      %v1315 = vmul.f32 %v1250, %v1250
      %v1316 = vmul.f32 %v1251, %v1251
      %v1317 = vmul.f32 %v1252, %v1252
      %v1318 = vmul.f32 %v1253, %v1253
      %v1319 = vmul.f32 %v1254, %v1254
      %v1320 = vmul.f32 %v1255, %v1255
      %v1321 = vmul.f32 %v1256, %v1256
      %v1322 = vmul.f32 %v1257, %v1257
      %v1323 = vmul.f32 %v1258, %v1258
      %v1324 = vmul.f32 %v1259, %v1259
      %v1325 = vmul.f32 %v1260, %v1260
      %v1326 = vmul.f32 %v1261, %v1261
      %v1327 = vmul.f32 %v1262, %v1262
      %v1328 = vmul.f32 %v1263, %v1263
      %v1329 = vadd.f32 %v1265, %v1266
      %v1330 = vadd.f32 %v1329, %v1267
      %v1331 = vadd.f32 %v1330, %v1268
      %v1332 = vadd.f32 %v1331, %v1269
      %v1333 = vadd.f32 %v1332, %v1270
      %v1334 = vadd.f32 %v1333, %v1271
      %v1335 = vadd.f32 %v1334, %v1272
      %v1336 = vadd.f32 %v1335, %v1273
      %v1337 = vadd.f32 %v1336, %v1274
      %v1338 = vadd.f32 %v1337, %v1275
      %v1339 = vadd.f32 %v1338, %v1276
      %v1340 = vadd.f32 %v1339, %v1277
      %v1341 = vadd.f32 %v1340, %v1278
      %v1342 = vadd.f32 %v1341, %v1279
      %v1343 = vadd.f32 %v1342, %v1280
      %v1344 = vadd.f32 %v1343, %v1281
      %v1345 = vadd.f32 %v1344, %v1282
      %v1346 = vadd.f32 %v1345, %v1283
      %v1347 = vadd.f32 %v1346, %v1284
      %v1348 = vadd.f32 %v1347, %v1285
      %v1349 = vadd.f32 %v1348, %v1286
      %v1350 = vadd.f32 %v1349, %v1287
      %v1351 = vadd.f32 %v1350, %v1288
      %v1352 = vadd.f32 %v1351, %v1289
      %v1353 = vadd.f32 %v1352, %v1290
      %v1354 = vadd.f32 %v1353, %v1291
      %v1355 = vadd.f32 %v1354, %v1292
      %v1356 = vadd.f32 %v1355, %v1293
      %v1357 = vadd.f32 %v1356, %v1294
      %v1358 = vadd.f32 %v1357, %v1295
      %v1359 = vadd.f32 %v1358, %v1296
      %v1360 = vadd.f32 %v1359, %v1297
      %v1361 = vadd.f32 %v1360, %v1298
      %v1362 = vadd.f32 %v1361, %v1299
      %v1363 = vadd.f32 %v1362, %v1300
      %v1364 = vadd.f32 %v1363, %v1301
      %v1365 = vadd.f32 %v1364, %v1302
      %v1366 = vadd.f32 %v1365, %v1303
      %v1367 = vadd.f32 %v1366, %v1304
      %v1368 = vadd.f32 %v1367, %v1305
      %v1369 = vadd.f32 %v1368, %v1306
      %v1370 = vadd.f32 %v1369, %v1307
      %v1371 = vadd.f32 %v1370, %v1308
      %v1372 = vadd.f32 %v1371, %v1309
      %v1373 = vadd.f32 %v1372, %v1310
      %v1374 = vadd.f32 %v1373, %v1311
      %v1375 = vadd.f32 %v1374, %v1312
      %v1376 = vadd.f32 %v1375, %v1313
      %v1377 = vadd.f32 %v1376, %v1314
      %v1378 = vadd.f32 %v1377, %v1315
      %v1379 = vadd.f32 %v1378, %v1316
      %v1380 = vadd.f32 %v1379, %v1317
      %v1381 = vadd.f32 %v1380, %v1318
      %v1382 = vadd.f32 %v1381, %v1319
      %v1383 = vadd.f32 %v1382, %v1320
      %v1384 = vadd.f32 %v1383, %v1321
      %v1385 = vadd.f32 %v1384, %v1322
      %v1386 = vadd.f32 %v1385, %v1323
      %v1387 = vadd.f32 %v1386, %v1324
      %v1388 = vadd.f32 %v1387, %v1325
      %v1389 = vadd.f32 %v1388, %v1326
      %v1390 = vadd.f32 %v1389, %v1327
      %v1391 = vadd.f32 %v1390, %v1328
      %v1392 = vrot.slane %v1391, 4
      %v1393 = vadd.f32 %v1391, %v1392
      %v1394 = vrot.slane %v1393, 2
      %v1395 = vadd.f32 %v1393, %v1394
      %v1396 = vrot.slane %v1395, 1
      %v1397 = vadd.f32 %v1395, %v1396
      %v1398 = vadd.f32 %v1264, %v1397
      %1399 = vst [vmem:[%s3] sm:$0x1] %v1398
      // Predicated region
      $region37: #{deconv_bn_prelu.2} parent=31 // pred_check
        %p1400 = pneg %p95
      $region38: #{deconv_bn_prelu.2} parent=31 // pred_check_branch
        %1402 = sbr.rel (%p1400) target = $region40
      $region39: #{deconv_bn_prelu.2} parent=31 // pred_region
        _
      $region40: #{deconv_bn_prelu.2} parent=31 // pred_fallthru
        _
      // Predicated region
      $region41: #{deconv_bn_prelu.2} parent=31 // pred_check
        %p1403 = pneg %p95
      $region42: #{deconv_bn_prelu.2} parent=31 // pred_check_branch
        %1405 = sbr.rel (%p1403) target = $region44
      $region43: #{deconv_bn_prelu.2} parent=31 // pred_region
        _
      $region44: #{deconv_bn_prelu.2} parent=31 // pred_fallthru
        _
    $region32: #{deconv_bn_prelu.2} parent=5 // pred_fallthru
      _
    %p1406 = scmp.le.s32.totalorder 2, %s9
    // Predicated region
    $region45: #{deconv_bn_prelu.2} parent=5 // pred_check
      %p1407 = pneg %p1406
    $region46: #{deconv_bn_prelu.2} parent=5 // pred_check_branch
      %1409 = sbr.rel (%p1407) target = $region48
    $region47: #{deconv_bn_prelu.2} parent=5 // pred_region
      %s1410 = ssub.s32 %s9, 2
    $region48: #{deconv_bn_prelu.2} parent=5 // pred_fallthru
      _
  $region6: #{deconv_bn_prelu.2} parent=0 // loop_footer
    %s13 = sadd.s32 1, %s9
  $region7: #{deconv_bn_prelu.2} parent=0 // loop_footer_branch
    %8 = sbr.rel target = $region3
  $region8: #{deconv_bn_prelu.2} parent=0 // loop_exit
    _

// kernel: deconv_bn_prelu.3
$region0: #{deconv_bn_prelu.3}
  #allocation0 [shape = 'u32[]', space=smem, size = 0x4, offset = 0x4, fixed_abs, tag = 'smem constant byte address 0x4 - core index']
  #allocation1 [shape = 'u32[144,128]{1,0:T(1,128)}', space=vmem, size = 0x12000, scoped, tag = 'internal scratch']
  %s0 = inlined_call_operand.vmem [shape: bf16[1024,64], index: 0, kind: input, shape index: {}]
  %s1 = inlined_call_operand.vmem [shape: bf16[64,128], index: 1, kind: input, shape index: {}]
  %s2 = inlined_call_operand.vmem [shape: f32[1,128], index: 2, kind: input, shape index: {}]
  %s3 = inlined_call_operand.vmem [shape: f32[1,128], index: 3, kind: input, shape index: {}]
  %s4 = inlined_call_operand.vmem [shape: f32[1,128], index: 4, kind: input, shape index: {}]
  %s5 = inlined_call_operand.vmem [shape: bf16[1024,128], index: 5, kind: output, shape index: {}]
  %s6 = sld [smem:[#allocation0]]
  $region53: #{deconv_bn_prelu.3} parent=0
    _
  %s8 = ssub.s32 1, %s6
  %s9 = scalar_select 0, %s8, %s6
  loop: start=0, step=1, limit=4
  $region2: #{deconv_bn_prelu.3} parent=0 // loop_pre_header
    _
  $region3: #{deconv_bn_prelu.3} parent=0 // loop_header
    %s11 = sphi 0, %s15
    %p12 = scmp.ge.s32.totalorder %s11, 4
    %s21 = sphi 0, %s23
    %s24 = sphi 0, %s21
    %s25 = sphi 0, %s24
    %s41 = sphi 0, %s25
    %s45 = sphi 0, %s45
    %s47 = sphi 0, %s45
    %s48 = sphi 0, %s47
    %s62 = sphi 0, %s48
    %s66 = sphi 0, %s66
    %s68 = sphi 0, %s66
    %s69 = sphi 0, %s68
    %s83 = sphi 0, %s69
    %s87 = sphi 0, %s87
    %s89 = sphi 0, %s87
    %s90 = sphi 0, %s89
    %s104 = sphi 0, %s90
    %s108 = sphi 0, %s108
    %s110 = sphi 0, %s108
    %s111 = sphi 0, %s110
    %s125 = sphi 0, %s111
    %s131 = sphi 0, %s133
    %s134 = sphi 0, %s131
    %s135 = sphi 0, %s134
    %s151 = sphi 0, %s135
  $region4: #{deconv_bn_prelu.3} parent=0 // loop_header_branch
    %14 = sbr.rel (%p12) target = $region8
  $region5: #{deconv_bn_prelu.3} parent=0 // loop_body
    %s16 = ssub.s32 %s11, 1
    %s17 = ssub.s32 %s11, 2
    %s18 = sadd.s32 %s11, 1
    %s19 = ssub.s32 %s11, %s18
    %p20 = scmp.eq.s32.totalorder %s19, 0
    %s22 = sadd.s32 %s21, 1
    %s23 = scalar_select %p20, %s21, %s22
    %p26 = pneg %p20
    %p27 = scmp.eq.s32.totalorder %s11, 1
    %p28 = por %p26, %p27
    %p29 = scmp.ne.s32.totalorder %s21, %s24
    %p30 = scmp.eq.s32.totalorder %s11, 0
    %p31 = por %p29, %p30
    %p32 = scmp.ne.s32.totalorder %s21, %s24
    %p33 = scmp.eq.s32.totalorder %s16, 1
    %p34 = por %p32, %p33
    %p35 = scmp.ne.s32.totalorder %s24, %s25
    %p36 = scmp.eq.s32.totalorder %s16, 0
    %p37 = por %p35, %p36
    %p38 = scmp.ne.s32.totalorder %s24, %s25
    %p39 = scmp.eq.s32.totalorder %s17, 1
    %p40 = por %p38, %p39
    %p42 = scmp.ne.s32.totalorder %s25, %s41
    %p43 = scmp.eq.s32.totalorder %s17, 0
    %p44 = por %p42, %p43
    %s46 = sadd.s32 %s45, 1
    %p49 = scmp.eq.s32.totalorder %s11, 1
    %p50 = scmp.ne.s32.totalorder %s45, %s47
    %p51 = scmp.eq.s32.totalorder %s11, 0
    %p52 = por %p50, %p51
    %p53 = scmp.ne.s32.totalorder %s45, %s47
    %p54 = scmp.eq.s32.totalorder %s16, 1
    %p55 = por %p53, %p54
    %p56 = scmp.ne.s32.totalorder %s47, %s48
    %p57 = scmp.eq.s32.totalorder %s16, 0
    %p58 = por %p56, %p57
    %p59 = scmp.ne.s32.totalorder %s47, %s48
    %p60 = scmp.eq.s32.totalorder %s17, 1
    %p61 = por %p59, %p60
    %p63 = scmp.ne.s32.totalorder %s48, %s62
    %p64 = scmp.eq.s32.totalorder %s17, 0
    %p65 = por %p63, %p64
    %s67 = sadd.s32 %s66, 1
    %p70 = scmp.eq.s32.totalorder %s11, 1
    %p71 = scmp.ne.s32.totalorder %s66, %s68
    %p72 = scmp.eq.s32.totalorder %s11, 0
    %p73 = por %p71, %p72
    %p74 = scmp.ne.s32.totalorder %s66, %s68
    %p75 = scmp.eq.s32.totalorder %s16, 1
    %p76 = por %p74, %p75
    %p77 = scmp.ne.s32.totalorder %s68, %s69
    %p78 = scmp.eq.s32.totalorder %s16, 0
    %p79 = por %p77, %p78
    %p80 = scmp.ne.s32.totalorder %s68, %s69
    %p81 = scmp.eq.s32.totalorder %s17, 1
    %p82 = por %p80, %p81
    %p84 = scmp.ne.s32.totalorder %s69, %s83
    %p85 = scmp.eq.s32.totalorder %s17, 0
    %p86 = por %p84, %p85
    %s88 = sadd.s32 %s87, 1
    %p91 = scmp.eq.s32.totalorder %s11, 1
    %p92 = scmp.ne.s32.totalorder %s87, %s89
    %p93 = scmp.eq.s32.totalorder %s11, 0
    %p94 = por %p92, %p93
    %p95 = scmp.ne.s32.totalorder %s87, %s89
    %p96 = scmp.eq.s32.totalorder %s16, 1
    %p97 = por %p95, %p96
    %p98 = scmp.ne.s32.totalorder %s89, %s90
    %p99 = scmp.eq.s32.totalorder %s16, 0
    %p100 = por %p98, %p99
    %p101 = scmp.ne.s32.totalorder %s89, %s90
    %p102 = scmp.eq.s32.totalorder %s17, 1
    %p103 = por %p101, %p102
    %p105 = scmp.ne.s32.totalorder %s90, %s104
    %p106 = scmp.eq.s32.totalorder %s17, 0
    %p107 = por %p105, %p106
    %s109 = sadd.s32 %s108, 1
    %p112 = scmp.eq.s32.totalorder %s11, 1
    %p113 = scmp.ne.s32.totalorder %s108, %s110
    %p114 = scmp.eq.s32.totalorder %s11, 0
    %p115 = por %p113, %p114
    %p116 = scmp.ne.s32.totalorder %s108, %s110
    %p117 = scmp.eq.s32.totalorder %s16, 1
    %p118 = por %p116, %p117
    %p119 = scmp.ne.s32.totalorder %s110, %s111
    %p120 = scmp.eq.s32.totalorder %s16, 0
    %p121 = por %p119, %p120
    %p122 = scmp.ne.s32.totalorder %s110, %s111
    %p123 = scmp.eq.s32.totalorder %s17, 1
    %p124 = por %p122, %p123
    %p126 = scmp.ne.s32.totalorder %s111, %s125
    %p127 = scmp.eq.s32.totalorder %s17, 0
    %p128 = por %p126, %p127
    %s129 = ssub.s32 %s11, %s18
    %p130 = scmp.eq.s32.totalorder %s129, 0
    %s132 = sadd.s32 %s131, 1
    %s133 = scalar_select %p130, %s131, %s132
    %p136 = pneg %p130
    %p137 = scmp.eq.s32.totalorder %s11, 1
    %p138 = por %p136, %p137
    %p139 = scmp.ne.s32.totalorder %s131, %s134
    %p140 = scmp.eq.s32.totalorder %s11, 0
    %p141 = por %p139, %p140
    %p142 = scmp.ne.s32.totalorder %s131, %s134
    %p143 = scmp.eq.s32.totalorder %s16, 1
    %p144 = por %p142, %p143
    %p145 = scmp.ne.s32.totalorder %s134, %s135
    %p146 = scmp.eq.s32.totalorder %s16, 0
    %p147 = por %p145, %p146
    %p148 = scmp.ne.s32.totalorder %s134, %s135
    %p149 = scmp.eq.s32.totalorder %s17, 1
    %p150 = por %p148, %p149
    %p152 = scmp.ne.s32.totalorder %s135, %s151
    %p153 = scmp.eq.s32.totalorder %s17, 0
    %p154 = por %p152, %p153
    %p155 = scmp.le.s32.totalorder 1, %s11
    %p156 = scmp.lt.s32.totalorder %s11, 3
    %p157 = pnand %p155, %p156
    %p158 = pneg %p157
    // Predicated region
    $region9: #{deconv_bn_prelu.3} parent=5 // pred_check
      _
    $region10: #{deconv_bn_prelu.3} parent=5 // pred_check_branch
      %160 = sbr.rel (%p157) target = $region12
    $region11: #{deconv_bn_prelu.3} parent=5 // pred_region
      %s161 = ssub.s32 %s11, 1
      // Predicated region
      $region13: #{deconv_bn_prelu.3} parent=11 // pred_check
        %p162 = pneg %p58
      $region14: #{deconv_bn_prelu.3} parent=11 // pred_check_branch
        %164 = sbr.rel (%p162) target = $region16
      $region15: #{deconv_bn_prelu.3} parent=11 // pred_region
        _
      $region16: #{deconv_bn_prelu.3} parent=11 // pred_fallthru
        _
      // Predicated region
      $region17: #{deconv_bn_prelu.3} parent=11 // pred_check
        %p165 = pneg %p79
      $region18: #{deconv_bn_prelu.3} parent=11 // pred_check_branch
        %167 = sbr.rel (%p165) target = $region20
      $region19: #{deconv_bn_prelu.3} parent=11 // pred_region
        _
      $region20: #{deconv_bn_prelu.3} parent=11 // pred_fallthru
        _
      // Predicated region
      $region21: #{deconv_bn_prelu.3} parent=11 // pred_check
        %p168 = pneg %p100
      $region22: #{deconv_bn_prelu.3} parent=11 // pred_check_branch
        %170 = sbr.rel (%p168) target = $region24
      $region23: #{deconv_bn_prelu.3} parent=11 // pred_region
        _
      $region24: #{deconv_bn_prelu.3} parent=11 // pred_fallthru
        _
      // Predicated region
      $region25: #{deconv_bn_prelu.3} parent=11 // pred_check
        %p171 = pneg %p121
      $region26: #{deconv_bn_prelu.3} parent=11 // pred_check_branch
        %173 = sbr.rel (%p171) target = $region28
      $region27: #{deconv_bn_prelu.3} parent=11 // pred_region
        _
      $region28: #{deconv_bn_prelu.3} parent=11 // pred_fallthru
        _
    $region12: #{deconv_bn_prelu.3} parent=5 // pred_fallthru
      _
    %p174 = scmp.lt.s32.totalorder %s11, 2
    // Predicated region
    $region29: #{deconv_bn_prelu.3} parent=5 // pred_check
      %p175 = pneg %p174
    $region30: #{deconv_bn_prelu.3} parent=5 // pred_check_branch
      %177 = sbr.rel (%p175) target = $region32
    $region31: #{deconv_bn_prelu.3} parent=5 // pred_region
      // Predicated region
      $region33: #{deconv_bn_prelu.3} parent=31 // pred_check
        %p178 = pneg %p31
      $region34: #{deconv_bn_prelu.3} parent=31 // pred_check_branch
        %180 = sbr.rel (%p178) target = $region36
      $region35: #{deconv_bn_prelu.3} parent=31 // pred_region
        %s181 = smul.u32 64, %s11
        %p182 = scmp.lt.s32.totalorder %s181, 127
        %s183 = scalar_select %p182, %s181, 127
        %s184 = smul.addr %s183, 4
        %s185 = scalar_lea.vmem %s0, %s184
        %s186 = smul.u32 64, %s11
      $region36: #{deconv_bn_prelu.3} parent=31 // pred_fallthru
        _
    $region32: #{deconv_bn_prelu.3} parent=5 // pred_fallthru
      _
    %p187 = scmp.le.s32.totalorder 1, %s11
    %p188 = scmp.lt.s32.totalorder %s11, 3
    %p189 = pnand %p187, %p188
    %p190 = pneg %p189
    // Predicated region
    $region37: #{deconv_bn_prelu.3} parent=5 // pred_check
      _
    $region38: #{deconv_bn_prelu.3} parent=5 // pred_check_branch
      %192 = sbr.rel (%p189) target = $region40
    $region39: #{deconv_bn_prelu.3} parent=5 // pred_region
      %s193 = ssub.s32 %s11, 1
      %s194 = smul.u32 64, %s16
      %p195 = scmp.lt.s32.totalorder %s194, 127
      %s196 = scalar_select %p195, %s194, 127
      %s197 = smul.addr %s196, 4
      %s198 = scalar_lea.vmem %s0, %s197
      %p199 = pneg %p37
      %p200 = pneg %p34
      %p201 = pneg %p58
      %p202 = pneg %p55
      %p203 = pneg %p79
      %p204 = pneg %p76
      %p205 = pneg %p100
      %p206 = pneg %p97
      %p207 = pneg %p121
      %p208 = pneg %p118
      %p209 = pneg %p147
      %p210 = pneg %p144
      %s211 = smul.u32 64, %s16
      %p212 = scmp.lt.s32.totalorder %s211, 127
      %s213 = scalar_select %p212, %s211, 127
      %s214 = smul.addr %s213, 4
      %s215 = scalar_lea.vmem %s5, %s214
      %s216 = smul.u32 64, %s16
      %p217 = scmp.lt.s32.totalorder %s216, 127
      %s218 = scalar_select %p217, %s216, 127
      %s219 = smul.addr %s218, 4
      %s220 = scalar_lea.vmem %s0, %s219
      %s221 = smul.u32 64, %s16
      %s222 = smul.u32 64, %s16
      %p223 = scmp.lt.s32.totalorder %s222, 127
      %s224 = scalar_select %p223, %s222, 127
      %s225 = smul.addr %s224, 4
      %s226 = scalar_lea.vmem %s5, %s225
      %s227 = smul.u32 64, %s16
      %v229 = vld [vmem:[%s220] sm:$0xf]
      %v230 = vld [vmem:[%s220 + $0x4] sm:$0xf]
      %v231 = vld [vmem:[%s220 + $0x8] sm:$0xf]
      %v232 = vld [vmem:[%s220 + $0xc] sm:$0xf]
      %v233 = vld [vmem:[%s220 + $0x10] sm:$0xf]
      %v234 = vld [vmem:[%s220 + $0x14] sm:$0xf]
      %v235 = vld [vmem:[%s220 + $0x18] sm:$0xf]
      %v236 = vld [vmem:[%s220 + $0x1c] sm:$0xf]
      %v237 = vld [vmem:[%s220 + $0x20] sm:$0xf]
      %v238 = vld [vmem:[%s220 + $0x24] sm:$0xf]
      %v239 = vld [vmem:[%s220 + $0x28] sm:$0xf]
      %v240 = vld [vmem:[%s220 + $0x2c] sm:$0xf]
      %v241 = vld [vmem:[%s220 + $0x30] sm:$0xf]
      %v242 = vld [vmem:[%s220 + $0x34] sm:$0xf]
      %v243 = vld [vmem:[%s220 + $0x38] sm:$0xf]
      %v244 = vld [vmem:[%s220 + $0x3c] sm:$0xf]
      %v245 = vld [vmem:[%s220 + $0x40] sm:$0xf]
      %v246 = vld [vmem:[%s220 + $0x44] sm:$0xf]
      %v247 = vld [vmem:[%s220 + $0x48] sm:$0xf]
      %v248 = vld [vmem:[%s220 + $0x4c] sm:$0xf]
      %v249 = vld [vmem:[%s220 + $0x50] sm:$0xf]
      %v250 = vld [vmem:[%s220 + $0x54] sm:$0xf]
      %v251 = vld [vmem:[%s220 + $0x58] sm:$0xf]
      %v252 = vld [vmem:[%s220 + $0x5c] sm:$0xf]
      %v253 = vld [vmem:[%s220 + $0x60] sm:$0xf]
      %v254 = vld [vmem:[%s220 + $0x64] sm:$0xf]
      %v255 = vld [vmem:[%s220 + $0x68] sm:$0xf]
      %v256 = vld [vmem:[%s220 + $0x6c] sm:$0xf]
      %v257 = vld [vmem:[%s220 + $0x70] sm:$0xf]
      %v258 = vld [vmem:[%s220 + $0x74] sm:$0xf]
      %v259 = vld [vmem:[%s220 + $0x78] sm:$0xf]
      %v260 = vld [vmem:[%s220 + $0x7c] sm:$0xf]
      %v261 = vld [vmem:[%s220 + $0x80] sm:$0xf]
      %v262 = vld [vmem:[%s220 + $0x84] sm:$0xf]
      %v263 = vld [vmem:[%s220 + $0x88] sm:$0xf]
      %v264 = vld [vmem:[%s220 + $0x8c] sm:$0xf]
      %v265 = vld [vmem:[%s220 + $0x90] sm:$0xf]
      %v266 = vld [vmem:[%s220 + $0x94] sm:$0xf]
      %v267 = vld [vmem:[%s220 + $0x98] sm:$0xf]
      %v268 = vld [vmem:[%s220 + $0x9c] sm:$0xf]
      %v269 = vld [vmem:[%s220 + $0xa0] sm:$0xf]
      %v270 = vld [vmem:[%s220 + $0xa4] sm:$0xf]
      %v271 = vld [vmem:[%s220 + $0xa8] sm:$0xf]
      %v272 = vld [vmem:[%s220 + $0xac] sm:$0xf]
      %v273 = vld [vmem:[%s220 + $0xb0] sm:$0xf]
      %v274 = vld [vmem:[%s220 + $0xb4] sm:$0xf]
      %v275 = vld [vmem:[%s220 + $0xb8] sm:$0xf]
      %v276 = vld [vmem:[%s220 + $0xbc] sm:$0xf]
      %v277 = vld [vmem:[%s220 + $0xc0] sm:$0xf]
      %v278 = vld [vmem:[%s220 + $0xc4] sm:$0xf]
      %v279 = vld [vmem:[%s220 + $0xc8] sm:$0xf]
      %v280 = vld [vmem:[%s220 + $0xcc] sm:$0xf]
      %v281 = vld [vmem:[%s220 + $0xd0] sm:$0xf]
      %v282 = vld [vmem:[%s220 + $0xd4] sm:$0xf]
      %v283 = vld [vmem:[%s220 + $0xd8] sm:$0xf]
      %v284 = vld [vmem:[%s220 + $0xdc] sm:$0xf]
      %v285 = vld [vmem:[%s220 + $0xe0] sm:$0xf]
      %v286 = vld [vmem:[%s220 + $0xe4] sm:$0xf]
      %v287 = vld [vmem:[%s220 + $0xe8] sm:$0xf]
      %v288 = vld [vmem:[%s220 + $0xec] sm:$0xf]
      %v289 = vld [vmem:[%s220 + $0xf0] sm:$0xf]
      %v290 = vld [vmem:[%s220 + $0xf4] sm:$0xf]
      %v291 = vld [vmem:[%s220 + $0xf8] sm:$0xf]
      %v292 = vld [vmem:[%s220 + $0xfc] sm:$0xf]
      %v293 = vld [vmem:[%s1] sm:$0xf]
      %v294 = vld [vmem:[%s1 + $0x4] sm:$0xf]
      %v295 = vld [vmem:[%s1 + $0x8] sm:$0xf]
      %v296 = vld [vmem:[%s1 + $0xc] sm:$0xf]
      %v297 = vld [vmem:[%s1 + $0x10] sm:$0xf]
      %v298 = vld [vmem:[%s1 + $0x14] sm:$0xf]
      %v299 = vld [vmem:[%s1 + $0x18] sm:$0xf]
      %v300 = vld [vmem:[%s1 + $0x1c] sm:$0xf]
      %v365 = vunpack.c.l.b16 %v229
      %v366 = vunpack.c.l.b16 %v230
      %v367 = vunpack.c.l.b16 %v231
      %v368 = vunpack.c.l.b16 %v232
      %v369 = vunpack.c.l.b16 %v233
      %v370 = vunpack.c.l.b16 %v234
      %v371 = vunpack.c.l.b16 %v235
      %v372 = vunpack.c.l.b16 %v236
      %v373 = vunpack.c.l.b16 %v237
      %v374 = vunpack.c.l.b16 %v238
      %v375 = vunpack.c.l.b16 %v239
      %v376 = vunpack.c.l.b16 %v240
      %v377 = vunpack.c.l.b16 %v241
      %v378 = vunpack.c.l.b16 %v242
      %v379 = vunpack.c.l.b16 %v243
      %v380 = vunpack.c.l.b16 %v244
      %v381 = vunpack.c.l.b16 %v245
      %v382 = vunpack.c.l.b16 %v246
      %v383 = vunpack.c.l.b16 %v247
      %v384 = vunpack.c.l.b16 %v248
      %v385 = vunpack.c.l.b16 %v249
      %v386 = vunpack.c.l.b16 %v250
      %v387 = vunpack.c.l.b16 %v251
      %v388 = vunpack.c.l.b16 %v252
      %v389 = vunpack.c.l.b16 %v253
      %v390 = vunpack.c.l.b16 %v254
      %v391 = vunpack.c.l.b16 %v255
      %v392 = vunpack.c.l.b16 %v256
      %v393 = vunpack.c.l.b16 %v257
      %v394 = vunpack.c.l.b16 %v258
      %v395 = vunpack.c.l.b16 %v259
      %v396 = vunpack.c.l.b16 %v260
      %v397 = vunpack.c.l.b16 %v261
      %v398 = vunpack.c.l.b16 %v262
      %v399 = vunpack.c.l.b16 %v263
      %v400 = vunpack.c.l.b16 %v264
      %v401 = vunpack.c.l.b16 %v265
      %v402 = vunpack.c.l.b16 %v266
      %v403 = vunpack.c.l.b16 %v267
      %v404 = vunpack.c.l.b16 %v268
      %v405 = vunpack.c.l.b16 %v269
      %v406 = vunpack.c.l.b16 %v270
      %v407 = vunpack.c.l.b16 %v271
      %v408 = vunpack.c.l.b16 %v272
      %v409 = vunpack.c.l.b16 %v273
      %v410 = vunpack.c.l.b16 %v274
      %v411 = vunpack.c.l.b16 %v275
      %v412 = vunpack.c.l.b16 %v276
      %v413 = vunpack.c.l.b16 %v277
      %v414 = vunpack.c.l.b16 %v278
      %v415 = vunpack.c.l.b16 %v279
      %v416 = vunpack.c.l.b16 %v280
      %v417 = vunpack.c.l.b16 %v281
      %v418 = vunpack.c.l.b16 %v282
      %v419 = vunpack.c.l.b16 %v283
      %v420 = vunpack.c.l.b16 %v284
      %v421 = vunpack.c.l.b16 %v285
      %v422 = vunpack.c.l.b16 %v286
      %v423 = vunpack.c.l.b16 %v287
      %v424 = vunpack.c.l.b16 %v288
      %v425 = vunpack.c.l.b16 %v289
      %v426 = vunpack.c.l.b16 %v290
      %v427 = vunpack.c.l.b16 %v291
      %v428 = vunpack.c.l.b16 %v292
      %v429 = vpack.c.b16 %v366, %v365
      %v430 = vpack.c.b16 %v368, %v367
      %v431 = vpack.c.b16 %v370, %v369
      %v432 = vpack.c.b16 %v372, %v371
      %v433 = vpack.c.b16 %v374, %v373
      %v434 = vpack.c.b16 %v376, %v375
      %v435 = vpack.c.b16 %v378, %v377
      %v436 = vpack.c.b16 %v380, %v379
      %v437 = vpack.c.b16 %v382, %v381
      %v438 = vpack.c.b16 %v384, %v383
      %v439 = vpack.c.b16 %v386, %v385
      %v440 = vpack.c.b16 %v388, %v387
      %v441 = vpack.c.b16 %v390, %v389
      %v442 = vpack.c.b16 %v392, %v391
      %v443 = vpack.c.b16 %v394, %v393
      %v444 = vpack.c.b16 %v396, %v395
      %v445 = vpack.c.b16 %v398, %v397
      %v446 = vpack.c.b16 %v400, %v399
      %v447 = vpack.c.b16 %v402, %v401
      %v448 = vpack.c.b16 %v404, %v403
      %v449 = vpack.c.b16 %v406, %v405
      %v450 = vpack.c.b16 %v408, %v407
      %v451 = vpack.c.b16 %v410, %v409
      %v452 = vpack.c.b16 %v412, %v411
      %v453 = vpack.c.b16 %v414, %v413
      %v454 = vpack.c.b16 %v416, %v415
      %v455 = vpack.c.b16 %v418, %v417
      %v456 = vpack.c.b16 %v420, %v419
      %v457 = vpack.c.b16 %v422, %v421
      %v458 = vpack.c.b16 %v424, %v423
      %v459 = vpack.c.b16 %v426, %v425
      %v460 = vpack.c.b16 %v428, %v427
      %v469 = vunpack.c.l.b16 %v293
      %v470 = vunpack.c.l.b16 %v294
      %v471 = vunpack.c.l.b16 %v295
      %v472 = vunpack.c.l.b16 %v296
      %v473 = vunpack.c.l.b16 %v297
      %v474 = vunpack.c.l.b16 %v298
      %v475 = vunpack.c.l.b16 %v299
      %v476 = vunpack.c.l.b16 %v300
      %v477 = vpack.c.b16 %v470, %v469
      %v478 = vpack.c.b16 %v472, %v471
      %v479 = vpack.c.b16 %v474, %v473
      %v480 = vpack.c.b16 %v476, %v475
      %vm485 = vcmask 523264
      %v487 = vsel %vm485, %v429, 0
      %v490 = vsel %vm485, %v430, 0
      %v493 = vsel %vm485, %v431, 0
      %v496 = vsel %vm485, %v432, 0
      %v499 = vsel %vm485, %v433, 0
      %v502 = vsel %vm485, %v434, 0
      %v505 = vsel %vm485, %v435, 0
      %v508 = vsel %vm485, %v436, 0
      %v511 = vsel %vm485, %v437, 0
      %v514 = vsel %vm485, %v438, 0
      %v517 = vsel %vm485, %v439, 0
      %v520 = vsel %vm485, %v440, 0
      %v523 = vsel %vm485, %v441, 0
      %v526 = vsel %vm485, %v442, 0
      %v529 = vsel %vm485, %v443, 0
      %v532 = vsel %vm485, %v444, 0
      %v535 = vsel %vm485, %v445, 0
      %v538 = vsel %vm485, %v446, 0
      %v541 = vsel %vm485, %v447, 0
      %v544 = vsel %vm485, %v448, 0
      %v547 = vsel %vm485, %v449, 0
      %v550 = vsel %vm485, %v450, 0
      %v553 = vsel %vm485, %v451, 0
      %v556 = vsel %vm485, %v452, 0
      %v559 = vsel %vm485, %v453, 0
      %v562 = vsel %vm485, %v454, 0
      %v565 = vsel %vm485, %v455, 0
      %v568 = vsel %vm485, %v456, 0
      %v571 = vsel %vm485, %v457, 0
      %v574 = vsel %vm485, %v458, 0
      %v577 = vsel %vm485, %v459, 0
      %v580 = vsel %vm485, %v460, 0
      %582 = vmatprep.subr.bf16.mxu0 0
      %583 = vmatpush1.bf16.msra.mxu0 %v477
      %584 = vmatprep.subr.bf16.mxu0 0
      %585 = vmatpush1.bf16.msra.mxu0 %v478
      %586 = vmatprep.subr.bf16.mxu0 0
      %587 = vmatpush1.bf16.msra.mxu0 %v479
      %588 = vmatprep.subr.bf16.mxu0 0
      %589 = vmatpush1.bf16.msra.mxu0 %v480
      %590 = vmatprep.subr.bf16.mxu0 0
      %591 = vmatpush1.bf16.msra.mxu0 0
      %592 = vmatprep.subr.bf16.mxu0 0
      %593 = vmatpush1.bf16.msra.mxu0 0
      %594 = vmatprep.subr.bf16.mxu0 0
      %595 = vmatpush1.bf16.msra.mxu0 0
      %596 = vmatprep.subr.bf16.mxu0 0
      %597 = vmatpush1.bf16.msra.mxu0 0
      %598 = vmatprep.subr.bf16.mxu0 0
      %599 = vmatpush1.bf16.msra.mxu0 0
      %600 = vmatprep.subr.bf16.mxu0 0
      %601 = vmatpush1.bf16.msra.mxu0 0
      %602 = vmatprep.subr.bf16.mxu0 0
      %603 = vmatpush1.bf16.msra.mxu0 0
      %604 = vmatprep.subr.bf16.mxu0 0
      %605 = vmatpush1.bf16.msra.mxu0 0
      %606 = vmatprep.subr.bf16.mxu0 0
      %607 = vmatpush1.bf16.msra.mxu0 0
      %608 = vmatprep.subr.bf16.mxu0 0
      %609 = vmatpush1.bf16.msra.mxu0 0
      %610 = vmatprep.subr.bf16.mxu0 0
      %611 = vmatpush1.bf16.msra.mxu0 0
      %612 = vmatprep.subr.bf16.mxu0 0
      %613 = vmatpush1.bf16.msra.mxu0 0
      %614 = vmatprep.mubr.bf16.mxu0 0
      %615 = vmatmul.mubr.bf16.gmra.mrb[0].mxu0 %v487
      %v616 = vpop.f32.mrb[0].mxu0
      %v617 = vadd.f32 0.0, %v616
      %v618 = vpop.f32.mrb[0].mxu0
      %v619 = vpop.f32.mrb[0].mxu0
      %v620 = vadd.f32 0.0, %v619
      %v621 = vpop.f32.mrb[0].mxu0
      %622 = vmatprep.mubr.bf16.mxu0 0
      %623 = vmatmul.mubr.bf16.gmra.mrb[0].mxu0 %v490
      %v624 = vpop.f32.mrb[0].mxu0
      %v625 = vadd.f32 0.0, %v624
      %v626 = vpop.f32.mrb[0].mxu0
      %v627 = vpop.f32.mrb[0].mxu0
      %v628 = vadd.f32 0.0, %v627
      %v629 = vpop.f32.mrb[0].mxu0
      %630 = vmatprep.mubr.bf16.mxu0 0
      %631 = vmatmul.mubr.bf16.gmra.mrb[0].mxu0 %v493
      %v632 = vpop.f32.mrb[0].mxu0
      %v633 = vadd.f32 0.0, %v632
      %v634 = vpop.f32.mrb[0].mxu0
      %v635 = vpop.f32.mrb[0].mxu0
      %v636 = vadd.f32 0.0, %v635
      %v637 = vpop.f32.mrb[0].mxu0
      %638 = vmatprep.mubr.bf16.mxu0 0
      %639 = vmatmul.mubr.bf16.gmra.mrb[0].mxu0 %v496
      %v640 = vpop.f32.mrb[0].mxu0
      %v641 = vadd.f32 0.0, %v640
      %v642 = vpop.f32.mrb[0].mxu0
      %v643 = vpop.f32.mrb[0].mxu0
      %v644 = vadd.f32 0.0, %v643
      %v645 = vpop.f32.mrb[0].mxu0
      %646 = vmatprep.mubr.bf16.mxu0 0
      %647 = vmatmul.mubr.bf16.gmra.mrb[0].mxu0 %v499
      %v648 = vpop.f32.mrb[0].mxu0
      %v649 = vadd.f32 0.0, %v648
      %v650 = vpop.f32.mrb[0].mxu0
      %v651 = vpop.f32.mrb[0].mxu0
      %v652 = vadd.f32 0.0, %v651
      %v653 = vpop.f32.mrb[0].mxu0
      %654 = vmatprep.mubr.bf16.mxu0 0
      %655 = vmatmul.mubr.bf16.gmra.mrb[0].mxu0 %v502
      %v656 = vpop.f32.mrb[0].mxu0
      %v657 = vadd.f32 0.0, %v656
      %v658 = vpop.f32.mrb[0].mxu0
      %v659 = vpop.f32.mrb[0].mxu0
      %v660 = vadd.f32 0.0, %v659
      %v661 = vpop.f32.mrb[0].mxu0
      %662 = vmatprep.mubr.bf16.mxu0 0
      %663 = vmatmul.mubr.bf16.gmra.mrb[0].mxu0 %v505
      %v664 = vpop.f32.mrb[0].mxu0
      %v665 = vadd.f32 0.0, %v664
      %v666 = vpop.f32.mrb[0].mxu0
      %v667 = vpop.f32.mrb[0].mxu0
      %v668 = vadd.f32 0.0, %v667
      %v669 = vpop.f32.mrb[0].mxu0
      %670 = vmatprep.mubr.bf16.mxu0 0
      %671 = vmatmul.mubr.bf16.gmra.mrb[0].mxu0 %v508
      %v672 = vpop.f32.mrb[0].mxu0
      %v673 = vadd.f32 0.0, %v672
      %v674 = vpop.f32.mrb[0].mxu0
      %v675 = vpop.f32.mrb[0].mxu0
      %v676 = vadd.f32 0.0, %v675
      %v677 = vpop.f32.mrb[0].mxu0
      %678 = vmatprep.mubr.bf16.mxu0 0
      %679 = vmatmul.mubr.bf16.gmra.mrb[0].mxu0 %v511
      %v680 = vpop.f32.mrb[0].mxu0
      %v681 = vadd.f32 0.0, %v680
      %v682 = vpop.f32.mrb[0].mxu0
      %v683 = vpop.f32.mrb[0].mxu0
      %v684 = vadd.f32 0.0, %v683
      %v685 = vpop.f32.mrb[0].mxu0
      %686 = vmatprep.mubr.bf16.mxu0 0
      %687 = vmatmul.mubr.bf16.gmra.mrb[0].mxu0 %v514
      %v688 = vpop.f32.mrb[0].mxu0
      %v689 = vadd.f32 0.0, %v688
      %v690 = vpop.f32.mrb[0].mxu0
      %v691 = vpop.f32.mrb[0].mxu0
      %v692 = vadd.f32 0.0, %v691
      %v693 = vpop.f32.mrb[0].mxu0
      %694 = vmatprep.mubr.bf16.mxu0 0
      %695 = vmatmul.mubr.bf16.gmra.mrb[0].mxu0 %v517
      %v696 = vpop.f32.mrb[0].mxu0
      %v697 = vadd.f32 0.0, %v696
      %v698 = vpop.f32.mrb[0].mxu0
      %v699 = vpop.f32.mrb[0].mxu0
      %v700 = vadd.f32 0.0, %v699
      %v701 = vpop.f32.mrb[0].mxu0
      %702 = vmatprep.mubr.bf16.mxu0 0
      %703 = vmatmul.mubr.bf16.gmra.mrb[0].mxu0 %v520
      %v704 = vpop.f32.mrb[0].mxu0
      %v705 = vadd.f32 0.0, %v704
      %v706 = vpop.f32.mrb[0].mxu0
      %v707 = vpop.f32.mrb[0].mxu0
      %v708 = vadd.f32 0.0, %v707
      %v709 = vpop.f32.mrb[0].mxu0
      %710 = vmatprep.mubr.bf16.mxu0 0
      %711 = vmatmul.mubr.bf16.gmra.mrb[0].mxu0 %v523
      %v712 = vpop.f32.mrb[0].mxu0
      %v713 = vadd.f32 0.0, %v712
      %v714 = vpop.f32.mrb[0].mxu0
      %v715 = vpop.f32.mrb[0].mxu0
      %v716 = vadd.f32 0.0, %v715
      %v717 = vpop.f32.mrb[0].mxu0
      %718 = vmatprep.mubr.bf16.mxu0 0
      %719 = vmatmul.mubr.bf16.gmra.mrb[0].mxu0 %v526
      %v720 = vpop.f32.mrb[0].mxu0
      %v721 = vadd.f32 0.0, %v720
      %v722 = vpop.f32.mrb[0].mxu0
      %v723 = vpop.f32.mrb[0].mxu0
      %v724 = vadd.f32 0.0, %v723
      %v725 = vpop.f32.mrb[0].mxu0
      %726 = vmatprep.mubr.bf16.mxu0 0
      %727 = vmatmul.mubr.bf16.gmra.mrb[0].mxu0 %v529
      %v728 = vpop.f32.mrb[0].mxu0
      %v729 = vadd.f32 0.0, %v728
      %v730 = vpop.f32.mrb[0].mxu0
      %v731 = vpop.f32.mrb[0].mxu0
      %v732 = vadd.f32 0.0, %v731
      %v733 = vpop.f32.mrb[0].mxu0
      %734 = vmatprep.mubr.bf16.mxu0 0
      %735 = vmatmul.mubr.bf16.gmra.mrb[0].mxu0 %v532
      %v736 = vpop.f32.mrb[0].mxu0
      %v737 = vadd.f32 0.0, %v736
      %v738 = vpop.f32.mrb[0].mxu0
      %v739 = vpop.f32.mrb[0].mxu0
      %v740 = vadd.f32 0.0, %v739
      %v741 = vpop.f32.mrb[0].mxu0
      %742 = vmatprep.mubr.bf16.mxu0 0
      %743 = vmatmul.mubr.bf16.gmra.mrb[0].mxu0 %v535
      %v744 = vpop.f32.mrb[0].mxu0
      %v745 = vadd.f32 0.0, %v744
      %v746 = vpop.f32.mrb[0].mxu0
      %v747 = vpop.f32.mrb[0].mxu0
      %v748 = vadd.f32 0.0, %v747
      %v749 = vpop.f32.mrb[0].mxu0
      %750 = vmatprep.mubr.bf16.mxu0 0
      %751 = vmatmul.mubr.bf16.gmra.mrb[0].mxu0 %v538
      %v752 = vpop.f32.mrb[0].mxu0
      %v753 = vadd.f32 0.0, %v752
      %v754 = vpop.f32.mrb[0].mxu0
      %v755 = vpop.f32.mrb[0].mxu0
      %v756 = vadd.f32 0.0, %v755
      %v757 = vpop.f32.mrb[0].mxu0
      %758 = vmatprep.mubr.bf16.mxu0 0
      %759 = vmatmul.mubr.bf16.gmra.mrb[0].mxu0 %v541
      %v760 = vpop.f32.mrb[0].mxu0
      %v761 = vadd.f32 0.0, %v760
      %v762 = vpop.f32.mrb[0].mxu0
      %v763 = vpop.f32.mrb[0].mxu0
      %v764 = vadd.f32 0.0, %v763
      %v765 = vpop.f32.mrb[0].mxu0
      %766 = vmatprep.mubr.bf16.mxu0 0
      %767 = vmatmul.mubr.bf16.gmra.mrb[0].mxu0 %v544
      %v768 = vpop.f32.mrb[0].mxu0
      %v769 = vadd.f32 0.0, %v768
      %v770 = vpop.f32.mrb[0].mxu0
      %v771 = vpop.f32.mrb[0].mxu0
      %v772 = vadd.f32 0.0, %v771
      %v773 = vpop.f32.mrb[0].mxu0
      %774 = vmatprep.mubr.bf16.mxu0 0
      %775 = vmatmul.mubr.bf16.gmra.mrb[0].mxu0 %v547
      %v776 = vpop.f32.mrb[0].mxu0
      %v777 = vadd.f32 0.0, %v776
      %v778 = vpop.f32.mrb[0].mxu0
      %v779 = vpop.f32.mrb[0].mxu0
      %v780 = vadd.f32 0.0, %v779
      %v781 = vpop.f32.mrb[0].mxu0
      %782 = vmatprep.mubr.bf16.mxu0 0
      %783 = vmatmul.mubr.bf16.gmra.mrb[0].mxu0 %v550
      %v784 = vpop.f32.mrb[0].mxu0
      %v785 = vadd.f32 0.0, %v784
      %v786 = vpop.f32.mrb[0].mxu0
      %v787 = vpop.f32.mrb[0].mxu0
      %v788 = vadd.f32 0.0, %v787
      %v789 = vpop.f32.mrb[0].mxu0
      %790 = vmatprep.mubr.bf16.mxu0 0
      %791 = vmatmul.mubr.bf16.gmra.mrb[0].mxu0 %v553
      %v792 = vpop.f32.mrb[0].mxu0
      %v793 = vadd.f32 0.0, %v792
      %v794 = vpop.f32.mrb[0].mxu0
      %v795 = vpop.f32.mrb[0].mxu0
      %v796 = vadd.f32 0.0, %v795
      %v797 = vpop.f32.mrb[0].mxu0
      %798 = vmatprep.mubr.bf16.mxu0 0
      %799 = vmatmul.mubr.bf16.gmra.mrb[0].mxu0 %v556
      %v800 = vpop.f32.mrb[0].mxu0
      %v801 = vadd.f32 0.0, %v800
      %v802 = vpop.f32.mrb[0].mxu0
      %v803 = vpop.f32.mrb[0].mxu0
      %v804 = vadd.f32 0.0, %v803
      %v805 = vpop.f32.mrb[0].mxu0
      %806 = vmatprep.mubr.bf16.mxu0 0
      %807 = vmatmul.mubr.bf16.gmra.mrb[0].mxu0 %v559
      %v808 = vpop.f32.mrb[0].mxu0
      %v809 = vadd.f32 0.0, %v808
      %v810 = vpop.f32.mrb[0].mxu0
      %v811 = vpop.f32.mrb[0].mxu0
      %v812 = vadd.f32 0.0, %v811
      %v813 = vpop.f32.mrb[0].mxu0
      %814 = vmatprep.mubr.bf16.mxu0 0
      %815 = vmatmul.mubr.bf16.gmra.mrb[0].mxu0 %v562
      %v816 = vpop.f32.mrb[0].mxu0
      %v817 = vadd.f32 0.0, %v816
      %v818 = vpop.f32.mrb[0].mxu0
      %v819 = vpop.f32.mrb[0].mxu0
      %v820 = vadd.f32 0.0, %v819
      %v821 = vpop.f32.mrb[0].mxu0
      %822 = vmatprep.mubr.bf16.mxu0 0
      %823 = vmatmul.mubr.bf16.gmra.mrb[0].mxu0 %v565
      %v824 = vpop.f32.mrb[0].mxu0
      %v825 = vadd.f32 0.0, %v824
      %v826 = vpop.f32.mrb[0].mxu0
      %v827 = vpop.f32.mrb[0].mxu0
      %v828 = vadd.f32 0.0, %v827
      %v829 = vpop.f32.mrb[0].mxu0
      %830 = vmatprep.mubr.bf16.mxu0 0
      %831 = vmatmul.mubr.bf16.gmra.mrb[0].mxu0 %v568
      %v832 = vpop.f32.mrb[0].mxu0
      %v833 = vadd.f32 0.0, %v832
      %v834 = vpop.f32.mrb[0].mxu0
      %v835 = vpop.f32.mrb[0].mxu0
      %v836 = vadd.f32 0.0, %v835
      %v837 = vpop.f32.mrb[0].mxu0
      %838 = vmatprep.mubr.bf16.mxu0 0
      %839 = vmatmul.mubr.bf16.gmra.mrb[0].mxu0 %v571
      %v840 = vpop.f32.mrb[0].mxu0
      %v841 = vadd.f32 0.0, %v840
      %v842 = vpop.f32.mrb[0].mxu0
      %v843 = vpop.f32.mrb[0].mxu0
      %v844 = vadd.f32 0.0, %v843
      %v845 = vpop.f32.mrb[0].mxu0
      %846 = vmatprep.mubr.bf16.mxu0 0
      %847 = vmatmul.mubr.bf16.gmra.mrb[0].mxu0 %v574
      %v848 = vpop.f32.mrb[0].mxu0
      %v849 = vadd.f32 0.0, %v848
      %v850 = vpop.f32.mrb[0].mxu0
      %v851 = vpop.f32.mrb[0].mxu0
      %v852 = vadd.f32 0.0, %v851
      %v853 = vpop.f32.mrb[0].mxu0
      %854 = vmatprep.mubr.bf16.mxu0 0
      %855 = vmatmul.mubr.bf16.gmra.mrb[0].mxu0 %v577
      %v856 = vpop.f32.mrb[0].mxu0
      %v857 = vadd.f32 0.0, %v856
      %v858 = vpop.f32.mrb[0].mxu0
      %v859 = vpop.f32.mrb[0].mxu0
      %v860 = vadd.f32 0.0, %v859
      %v861 = vpop.f32.mrb[0].mxu0
      %862 = vmatprep.mubr.bf16.mxu0 0
      %863 = vmatmul.mubr.bf16.gmra.mrb[0].mxu0 %v580
      %v864 = vpop.f32.mrb[0].mxu0
      %v865 = vadd.f32 0.0, %v864
      %v866 = vpop.f32.mrb[0].mxu0
      %v867 = vpop.f32.mrb[0].mxu0
      %v868 = vadd.f32 0.0, %v867
      %v869 = vpop.f32.mrb[0].mxu0
      %870 = vdwg.mxu0
      %v871 = vld [vmem:[%s2] sm:$0x1]
      %v873 = vlaneseq
      %v874 = vshrl.u32 %v873, 7
      %v875 = vsub.s32 0, %v874
      %v876 = vrot.slane %v871, %v875
      %v878 = vmul.f32 %v617, %v876
      %v879 = vmul.f32 %v620, %v876
      %v880 = vmul.f32 %v625, %v876
      %v881 = vmul.f32 %v628, %v876
      %v882 = vmul.f32 %v633, %v876
      %v883 = vmul.f32 %v636, %v876
      %v884 = vmul.f32 %v641, %v876
      %v885 = vmul.f32 %v644, %v876
      %v886 = vmul.f32 %v649, %v876
      %v887 = vmul.f32 %v652, %v876
      %v888 = vmul.f32 %v657, %v876
      %v889 = vmul.f32 %v660, %v876
      %v890 = vmul.f32 %v665, %v876
      %v891 = vmul.f32 %v668, %v876
      %v892 = vmul.f32 %v673, %v876
      %v893 = vmul.f32 %v676, %v876
      %v894 = vmul.f32 %v681, %v876
      %v895 = vmul.f32 %v684, %v876
      %v896 = vmul.f32 %v689, %v876
      %v897 = vmul.f32 %v692, %v876
      %v898 = vmul.f32 %v697, %v876
      %v899 = vmul.f32 %v700, %v876
      %v900 = vmul.f32 %v705, %v876
      %v901 = vmul.f32 %v708, %v876
      %v902 = vmul.f32 %v713, %v876
      %v903 = vmul.f32 %v716, %v876
      %v904 = vmul.f32 %v721, %v876
      %v905 = vmul.f32 %v724, %v876
      %v906 = vmul.f32 %v729, %v876
      %v907 = vmul.f32 %v732, %v876
      %v908 = vmul.f32 %v737, %v876
      %v909 = vmul.f32 %v740, %v876
      %v910 = vmul.f32 %v745, %v876
      %v911 = vmul.f32 %v748, %v876
      %v912 = vmul.f32 %v753, %v876
      %v913 = vmul.f32 %v756, %v876
      %v914 = vmul.f32 %v761, %v876
      %v915 = vmul.f32 %v764, %v876
      %v916 = vmul.f32 %v769, %v876
      %v917 = vmul.f32 %v772, %v876
      %v918 = vmul.f32 %v777, %v876
      %v919 = vmul.f32 %v780, %v876
      %v920 = vmul.f32 %v785, %v876
      %v921 = vmul.f32 %v788, %v876
      %v922 = vmul.f32 %v793, %v876
      %v923 = vmul.f32 %v796, %v876
      %v924 = vmul.f32 %v801, %v876
      %v925 = vmul.f32 %v804, %v876
      %v926 = vmul.f32 %v809, %v876
      %v927 = vmul.f32 %v812, %v876
      %v928 = vmul.f32 %v817, %v876
      %v929 = vmul.f32 %v820, %v876
      %v930 = vmul.f32 %v825, %v876
      %v931 = vmul.f32 %v828, %v876
      %v932 = vmul.f32 %v833, %v876
      %v933 = vmul.f32 %v836, %v876
      %v934 = vmul.f32 %v841, %v876
      %v935 = vmul.f32 %v844, %v876
      %v936 = vmul.f32 %v849, %v876
      %v937 = vmul.f32 %v852, %v876
      %v938 = vmul.f32 %v857, %v876
      %v939 = vmul.f32 %v860, %v876
      %v940 = vmul.f32 %v865, %v876
      %v941 = vmul.f32 %v868, %v876
      %v942 = vld [vmem:[%s3] sm:$0x1]
      %v944 = vlaneseq
      %v945 = vshrl.u32 %v944, 7
      %v946 = vsub.s32 0, %v945
      %v947 = vrot.slane %v942, %v946
      %v949 = vadd.f32 %v878, %v947
      %v950 = vadd.f32 %v879, %v947
      %v951 = vadd.f32 %v880, %v947
      %v952 = vadd.f32 %v881, %v947
      %v953 = vadd.f32 %v882, %v947
      %v954 = vadd.f32 %v883, %v947
      %v955 = vadd.f32 %v884, %v947
      %v956 = vadd.f32 %v885, %v947
      %v957 = vadd.f32 %v886, %v947
      %v958 = vadd.f32 %v887, %v947
      %v959 = vadd.f32 %v888, %v947
      %v960 = vadd.f32 %v889, %v947
      %v961 = vadd.f32 %v890, %v947
      %v962 = vadd.f32 %v891, %v947
      %v963 = vadd.f32 %v892, %v947
      %v964 = vadd.f32 %v893, %v947
      %v965 = vadd.f32 %v894, %v947
      %v966 = vadd.f32 %v895, %v947
      %v967 = vadd.f32 %v896, %v947
      %v968 = vadd.f32 %v897, %v947
      %v969 = vadd.f32 %v898, %v947
      %v970 = vadd.f32 %v899, %v947
      %v971 = vadd.f32 %v900, %v947
      %v972 = vadd.f32 %v901, %v947
      %v973 = vadd.f32 %v902, %v947
      %v974 = vadd.f32 %v903, %v947
      %v975 = vadd.f32 %v904, %v947
      %v976 = vadd.f32 %v905, %v947
      %v977 = vadd.f32 %v906, %v947
      %v978 = vadd.f32 %v907, %v947
      %v979 = vadd.f32 %v908, %v947
      %v980 = vadd.f32 %v909, %v947
      %v981 = vadd.f32 %v910, %v947
      %v982 = vadd.f32 %v911, %v947
      %v983 = vadd.f32 %v912, %v947
      %v984 = vadd.f32 %v913, %v947
      %v985 = vadd.f32 %v914, %v947
      %v986 = vadd.f32 %v915, %v947
      %v987 = vadd.f32 %v916, %v947
      %v988 = vadd.f32 %v917, %v947
      %v989 = vadd.f32 %v918, %v947
      %v990 = vadd.f32 %v919, %v947
      %v991 = vadd.f32 %v920, %v947
      %v992 = vadd.f32 %v921, %v947
      %v993 = vadd.f32 %v922, %v947
      %v994 = vadd.f32 %v923, %v947
      %v995 = vadd.f32 %v924, %v947
      %v996 = vadd.f32 %v925, %v947
      %v997 = vadd.f32 %v926, %v947
      %v998 = vadd.f32 %v927, %v947
      %v999 = vadd.f32 %v928, %v947
      %v1000 = vadd.f32 %v929, %v947
      %v1001 = vadd.f32 %v930, %v947
      %v1002 = vadd.f32 %v931, %v947
      %v1003 = vadd.f32 %v932, %v947
      %v1004 = vadd.f32 %v933, %v947
      %v1005 = vadd.f32 %v934, %v947
      %v1006 = vadd.f32 %v935, %v947
      %v1007 = vadd.f32 %v936, %v947
      %v1008 = vadd.f32 %v937, %v947
      %v1009 = vadd.f32 %v938, %v947
      %v1010 = vadd.f32 %v939, %v947
      %v1011 = vadd.f32 %v940, %v947
      %v1012 = vadd.f32 %v941, %v947
      %vm1013 = vcmp.ge.f32.partialorder %v949, 0.0
      %vm1014 = vcmp.ge.f32.partialorder %v950, 0.0
      %vm1015 = vcmp.ge.f32.partialorder %v951, 0.0
      %vm1016 = vcmp.ge.f32.partialorder %v952, 0.0
      %vm1017 = vcmp.ge.f32.partialorder %v953, 0.0
      %vm1018 = vcmp.ge.f32.partialorder %v954, 0.0
      %vm1019 = vcmp.ge.f32.partialorder %v955, 0.0
      %vm1020 = vcmp.ge.f32.partialorder %v956, 0.0
      %vm1021 = vcmp.ge.f32.partialorder %v957, 0.0
      %vm1022 = vcmp.ge.f32.partialorder %v958, 0.0
      %vm1023 = vcmp.ge.f32.partialorder %v959, 0.0
      %vm1024 = vcmp.ge.f32.partialorder %v960, 0.0
      %vm1025 = vcmp.ge.f32.partialorder %v961, 0.0
      %vm1026 = vcmp.ge.f32.partialorder %v962, 0.0
      %vm1027 = vcmp.ge.f32.partialorder %v963, 0.0
      %vm1028 = vcmp.ge.f32.partialorder %v964, 0.0
      %vm1029 = vcmp.ge.f32.partialorder %v965, 0.0
      %vm1030 = vcmp.ge.f32.partialorder %v966, 0.0
      %vm1031 = vcmp.ge.f32.partialorder %v967, 0.0
      %vm1032 = vcmp.ge.f32.partialorder %v968, 0.0
      %vm1033 = vcmp.ge.f32.partialorder %v969, 0.0
      %vm1034 = vcmp.ge.f32.partialorder %v970, 0.0
      %vm1035 = vcmp.ge.f32.partialorder %v971, 0.0
      %vm1036 = vcmp.ge.f32.partialorder %v972, 0.0
      %vm1037 = vcmp.ge.f32.partialorder %v973, 0.0
      %vm1038 = vcmp.ge.f32.partialorder %v974, 0.0
      %vm1039 = vcmp.ge.f32.partialorder %v975, 0.0
      %vm1040 = vcmp.ge.f32.partialorder %v976, 0.0
      %vm1041 = vcmp.ge.f32.partialorder %v977, 0.0
      %vm1042 = vcmp.ge.f32.partialorder %v978, 0.0
      %vm1043 = vcmp.ge.f32.partialorder %v979, 0.0
      %vm1044 = vcmp.ge.f32.partialorder %v980, 0.0
      %vm1045 = vcmp.ge.f32.partialorder %v981, 0.0
      %vm1046 = vcmp.ge.f32.partialorder %v982, 0.0
      %vm1047 = vcmp.ge.f32.partialorder %v983, 0.0
      %vm1048 = vcmp.ge.f32.partialorder %v984, 0.0
      %vm1049 = vcmp.ge.f32.partialorder %v985, 0.0
      %vm1050 = vcmp.ge.f32.partialorder %v986, 0.0
      %vm1051 = vcmp.ge.f32.partialorder %v987, 0.0
      %vm1052 = vcmp.ge.f32.partialorder %v988, 0.0
      %vm1053 = vcmp.ge.f32.partialorder %v989, 0.0
      %vm1054 = vcmp.ge.f32.partialorder %v990, 0.0
      %vm1055 = vcmp.ge.f32.partialorder %v991, 0.0
      %vm1056 = vcmp.ge.f32.partialorder %v992, 0.0
      %vm1057 = vcmp.ge.f32.partialorder %v993, 0.0
      %vm1058 = vcmp.ge.f32.partialorder %v994, 0.0
      %vm1059 = vcmp.ge.f32.partialorder %v995, 0.0
      %vm1060 = vcmp.ge.f32.partialorder %v996, 0.0
      %vm1061 = vcmp.ge.f32.partialorder %v997, 0.0
      %vm1062 = vcmp.ge.f32.partialorder %v998, 0.0
      %vm1063 = vcmp.ge.f32.partialorder %v999, 0.0
      %vm1064 = vcmp.ge.f32.partialorder %v1000, 0.0
      %vm1065 = vcmp.ge.f32.partialorder %v1001, 0.0
      %vm1066 = vcmp.ge.f32.partialorder %v1002, 0.0
      %vm1067 = vcmp.ge.f32.partialorder %v1003, 0.0
      %vm1068 = vcmp.ge.f32.partialorder %v1004, 0.0
      %vm1069 = vcmp.ge.f32.partialorder %v1005, 0.0
      %vm1070 = vcmp.ge.f32.partialorder %v1006, 0.0
      %vm1071 = vcmp.ge.f32.partialorder %v1007, 0.0
      %vm1072 = vcmp.ge.f32.partialorder %v1008, 0.0
      %vm1073 = vcmp.ge.f32.partialorder %v1009, 0.0
      %vm1074 = vcmp.ge.f32.partialorder %v1010, 0.0
      %vm1075 = vcmp.ge.f32.partialorder %v1011, 0.0
      %vm1076 = vcmp.ge.f32.partialorder %v1012, 0.0
      %v1077 = vld [vmem:[%s4] sm:$0x1]
      %v1079 = vlaneseq
      %v1080 = vshrl.u32 %v1079, 7
      %v1081 = vsub.s32 0, %v1080
      %v1082 = vrot.slane %v1077, %v1081
      %v1084 = vmul.f32 %v1082, %v949
      %v1085 = vmul.f32 %v1082, %v950
      %v1086 = vmul.f32 %v1082, %v951
      %v1087 = vmul.f32 %v1082, %v952
      %v1088 = vmul.f32 %v1082, %v953
      %v1089 = vmul.f32 %v1082, %v954
      %v1090 = vmul.f32 %v1082, %v955
      %v1091 = vmul.f32 %v1082, %v956
      %v1092 = vmul.f32 %v1082, %v957
      %v1093 = vmul.f32 %v1082, %v958
      %v1094 = vmul.f32 %v1082, %v959
      %v1095 = vmul.f32 %v1082, %v960
      %v1096 = vmul.f32 %v1082, %v961
      %v1097 = vmul.f32 %v1082, %v962
      %v1098 = vmul.f32 %v1082, %v963
      %v1099 = vmul.f32 %v1082, %v964
      %v1100 = vmul.f32 %v1082, %v965
      %v1101 = vmul.f32 %v1082, %v966
      %v1102 = vmul.f32 %v1082, %v967
      %v1103 = vmul.f32 %v1082, %v968
      %v1104 = vmul.f32 %v1082, %v969
      %v1105 = vmul.f32 %v1082, %v970
      %v1106 = vmul.f32 %v1082, %v971
      %v1107 = vmul.f32 %v1082, %v972
      %v1108 = vmul.f32 %v1082, %v973
      %v1109 = vmul.f32 %v1082, %v974
      %v1110 = vmul.f32 %v1082, %v975
      %v1111 = vmul.f32 %v1082, %v976
      %v1112 = vmul.f32 %v1082, %v977
      %v1113 = vmul.f32 %v1082, %v978
      %v1114 = vmul.f32 %v1082, %v979
      %v1115 = vmul.f32 %v1082, %v980
      %v1116 = vmul.f32 %v1082, %v981
      %v1117 = vmul.f32 %v1082, %v982
      %v1118 = vmul.f32 %v1082, %v983
      %v1119 = vmul.f32 %v1082, %v984
      %v1120 = vmul.f32 %v1082, %v985
      %v1121 = vmul.f32 %v1082, %v986
      %v1122 = vmul.f32 %v1082, %v987
      %v1123 = vmul.f32 %v1082, %v988
      %v1124 = vmul.f32 %v1082, %v989
      %v1125 = vmul.f32 %v1082, %v990
      %v1126 = vmul.f32 %v1082, %v991
      %v1127 = vmul.f32 %v1082, %v992
      %v1128 = vmul.f32 %v1082, %v993
      %v1129 = vmul.f32 %v1082, %v994
      %v1130 = vmul.f32 %v1082, %v995
      %v1131 = vmul.f32 %v1082, %v996
      %v1132 = vmul.f32 %v1082, %v997
      %v1133 = vmul.f32 %v1082, %v998
      %v1134 = vmul.f32 %v1082, %v999
      %v1135 = vmul.f32 %v1082, %v1000
      %v1136 = vmul.f32 %v1082, %v1001
      %v1137 = vmul.f32 %v1082, %v1002
      %v1138 = vmul.f32 %v1082, %v1003
      %v1139 = vmul.f32 %v1082, %v1004
      %v1140 = vmul.f32 %v1082, %v1005
      %v1141 = vmul.f32 %v1082, %v1006
      %v1142 = vmul.f32 %v1082, %v1007
      %v1143 = vmul.f32 %v1082, %v1008
      %v1144 = vmul.f32 %v1082, %v1009
      %v1145 = vmul.f32 %v1082, %v1010
      %v1146 = vmul.f32 %v1082, %v1011
      %v1147 = vmul.f32 %v1082, %v1012
      %v1148 = vsel %vm1013, %v949, %v1084
      %v1149 = vsel %vm1014, %v950, %v1085
      %v1150 = vsel %vm1015, %v951, %v1086
      %v1151 = vsel %vm1016, %v952, %v1087
      %v1152 = vsel %vm1017, %v953, %v1088
      %v1153 = vsel %vm1018, %v954, %v1089
      %v1154 = vsel %vm1019, %v955, %v1090
      %v1155 = vsel %vm1020, %v956, %v1091
      %v1156 = vsel %vm1021, %v957, %v1092
      %v1157 = vsel %vm1022, %v958, %v1093
      %v1158 = vsel %vm1023, %v959, %v1094
      %v1159 = vsel %vm1024, %v960, %v1095
      %v1160 = vsel %vm1025, %v961, %v1096
      %v1161 = vsel %vm1026, %v962, %v1097
      %v1162 = vsel %vm1027, %v963, %v1098
      %v1163 = vsel %vm1028, %v964, %v1099
      %v1164 = vsel %vm1029, %v965, %v1100
      %v1165 = vsel %vm1030, %v966, %v1101
      %v1166 = vsel %vm1031, %v967, %v1102
      %v1167 = vsel %vm1032, %v968, %v1103
      %v1168 = vsel %vm1033, %v969, %v1104
      %v1169 = vsel %vm1034, %v970, %v1105
      %v1170 = vsel %vm1035, %v971, %v1106
      %v1171 = vsel %vm1036, %v972, %v1107
      %v1172 = vsel %vm1037, %v973, %v1108
      %v1173 = vsel %vm1038, %v974, %v1109
      %v1174 = vsel %vm1039, %v975, %v1110
      %v1175 = vsel %vm1040, %v976, %v1111
      %v1176 = vsel %vm1041, %v977, %v1112
      %v1177 = vsel %vm1042, %v978, %v1113
      %v1178 = vsel %vm1043, %v979, %v1114
      %v1179 = vsel %vm1044, %v980, %v1115
      %v1180 = vsel %vm1045, %v981, %v1116
      %v1181 = vsel %vm1046, %v982, %v1117
      %v1182 = vsel %vm1047, %v983, %v1118
      %v1183 = vsel %vm1048, %v984, %v1119
      %v1184 = vsel %vm1049, %v985, %v1120
      %v1185 = vsel %vm1050, %v986, %v1121
      %v1186 = vsel %vm1051, %v987, %v1122
      %v1187 = vsel %vm1052, %v988, %v1123
      %v1188 = vsel %vm1053, %v989, %v1124
      %v1189 = vsel %vm1054, %v990, %v1125
      %v1190 = vsel %vm1055, %v991, %v1126
      %v1191 = vsel %vm1056, %v992, %v1127
      %v1192 = vsel %vm1057, %v993, %v1128
      %v1193 = vsel %vm1058, %v994, %v1129
      %v1194 = vsel %vm1059, %v995, %v1130
      %v1195 = vsel %vm1060, %v996, %v1131
      %v1196 = vsel %vm1061, %v997, %v1132
      %v1197 = vsel %vm1062, %v998, %v1133
      %v1198 = vsel %vm1063, %v999, %v1134
      %v1199 = vsel %vm1064, %v1000, %v1135
      %v1200 = vsel %vm1065, %v1001, %v1136
      %v1201 = vsel %vm1066, %v1002, %v1137
      %v1202 = vsel %vm1067, %v1003, %v1138
      %v1203 = vsel %vm1068, %v1004, %v1139
      %v1204 = vsel %vm1069, %v1005, %v1140
      %v1205 = vsel %vm1070, %v1006, %v1141
      %v1206 = vsel %vm1071, %v1007, %v1142
      %v1207 = vsel %vm1072, %v1008, %v1143
      %v1208 = vsel %vm1073, %v1009, %v1144
      %v1209 = vsel %vm1074, %v1010, %v1145
      %v1210 = vsel %vm1075, %v1011, %v1146
      %v1211 = vsel %vm1076, %v1012, %v1147
      %v1212 = vpack.c.bf16 %v1149, %v1148
      %v1213 = vpack.c.bf16 %v1151, %v1150
      %v1214 = vpack.c.bf16 %v1153, %v1152
      %v1215 = vpack.c.bf16 %v1155, %v1154
      %v1216 = vpack.c.bf16 %v1157, %v1156
      %v1217 = vpack.c.bf16 %v1159, %v1158
      %v1218 = vpack.c.bf16 %v1161, %v1160
      %v1219 = vpack.c.bf16 %v1163, %v1162
      %v1220 = vpack.c.bf16 %v1165, %v1164
      %v1221 = vpack.c.bf16 %v1167, %v1166
      %v1222 = vpack.c.bf16 %v1169, %v1168
      %v1223 = vpack.c.bf16 %v1171, %v1170
      %v1224 = vpack.c.bf16 %v1173, %v1172
      %v1225 = vpack.c.bf16 %v1175, %v1174
      %v1226 = vpack.c.bf16 %v1177, %v1176
      %v1227 = vpack.c.bf16 %v1179, %v1178
      %v1228 = vpack.c.bf16 %v1181, %v1180
      %v1229 = vpack.c.bf16 %v1183, %v1182
      %v1230 = vpack.c.bf16 %v1185, %v1184
      %v1231 = vpack.c.bf16 %v1187, %v1186
      %v1232 = vpack.c.bf16 %v1189, %v1188
      %v1233 = vpack.c.bf16 %v1191, %v1190
      %v1234 = vpack.c.bf16 %v1193, %v1192
      %v1235 = vpack.c.bf16 %v1195, %v1194
      %v1236 = vpack.c.bf16 %v1197, %v1196
      %v1237 = vpack.c.bf16 %v1199, %v1198
      %v1238 = vpack.c.bf16 %v1201, %v1200
      %v1239 = vpack.c.bf16 %v1203, %v1202
      %v1240 = vpack.c.bf16 %v1205, %v1204
      %v1241 = vpack.c.bf16 %v1207, %v1206
      %v1242 = vpack.c.bf16 %v1209, %v1208
      %v1243 = vpack.c.bf16 %v1211, %v1210
      %v1276 = vunpack.c.l.b16 %v1212
      %v1277 = vunpack.c.h.b16 %v1212
      %v1278 = vunpack.c.l.b16 %v1213
      %v1279 = vunpack.c.h.b16 %v1213
      %v1280 = vunpack.c.l.b16 %v1214
      %v1281 = vunpack.c.h.b16 %v1214
      %v1282 = vunpack.c.l.b16 %v1215
      %v1283 = vunpack.c.h.b16 %v1215
      %v1284 = vunpack.c.l.b16 %v1216
      %v1285 = vunpack.c.h.b16 %v1216
      %v1286 = vunpack.c.l.b16 %v1217
      %v1287 = vunpack.c.h.b16 %v1217
      %v1288 = vunpack.c.l.b16 %v1218
      %v1289 = vunpack.c.h.b16 %v1218
      %v1290 = vunpack.c.l.b16 %v1219
      %v1291 = vunpack.c.h.b16 %v1219
      %v1292 = vunpack.c.l.b16 %v1220
      %v1293 = vunpack.c.h.b16 %v1220
      %v1294 = vunpack.c.l.b16 %v1221
      %v1295 = vunpack.c.h.b16 %v1221
      %v1296 = vunpack.c.l.b16 %v1222
      %v1297 = vunpack.c.h.b16 %v1222
      %v1298 = vunpack.c.l.b16 %v1223
      %v1299 = vunpack.c.h.b16 %v1223
      %v1300 = vunpack.c.l.b16 %v1224
      %v1301 = vunpack.c.h.b16 %v1224
      %v1302 = vunpack.c.l.b16 %v1225
      %v1303 = vunpack.c.h.b16 %v1225
      %v1304 = vunpack.c.l.b16 %v1226
      %v1305 = vunpack.c.h.b16 %v1226
      %v1306 = vunpack.c.l.b16 %v1227
      %v1307 = vunpack.c.h.b16 %v1227
      %v1308 = vunpack.c.l.b16 %v1228
      %v1309 = vunpack.c.h.b16 %v1228
      %v1310 = vunpack.c.l.b16 %v1229
      %v1311 = vunpack.c.h.b16 %v1229
      %v1312 = vunpack.c.l.b16 %v1230
      %v1313 = vunpack.c.h.b16 %v1230
      %v1314 = vunpack.c.l.b16 %v1231
      %v1315 = vunpack.c.h.b16 %v1231
      %v1316 = vunpack.c.l.b16 %v1232
      %v1317 = vunpack.c.h.b16 %v1232
      %v1318 = vunpack.c.l.b16 %v1233
      %v1319 = vunpack.c.h.b16 %v1233
      %v1320 = vunpack.c.l.b16 %v1234
      %v1321 = vunpack.c.h.b16 %v1234
      %v1322 = vunpack.c.l.b16 %v1235
      %v1323 = vunpack.c.h.b16 %v1235
      %v1324 = vunpack.c.l.b16 %v1236
      %v1325 = vunpack.c.h.b16 %v1236
      %v1326 = vunpack.c.l.b16 %v1237
      %v1327 = vunpack.c.h.b16 %v1237
      %v1328 = vunpack.c.l.b16 %v1238
      %v1329 = vunpack.c.h.b16 %v1238
      %v1330 = vunpack.c.l.b16 %v1239
      %v1331 = vunpack.c.h.b16 %v1239
      %v1332 = vunpack.c.l.b16 %v1240
      %v1333 = vunpack.c.h.b16 %v1240
      %v1334 = vunpack.c.l.b16 %v1241
      %v1335 = vunpack.c.h.b16 %v1241
      %v1336 = vunpack.c.l.b16 %v1242
      %v1337 = vunpack.c.h.b16 %v1242
      %v1338 = vunpack.c.l.b16 %v1243
      %v1339 = vunpack.c.h.b16 %v1243
      %v1340 = vpack.c.b16 %v1276, %v1276
      %v1341 = vpack.c.b16 %v1277, %v1277
      %v1342 = vpack.c.b16 %v1278, %v1278
      %v1343 = vpack.c.b16 %v1279, %v1279
      %v1344 = vpack.c.b16 %v1280, %v1280
      %v1345 = vpack.c.b16 %v1281, %v1281
      %v1346 = vpack.c.b16 %v1282, %v1282
      %v1347 = vpack.c.b16 %v1283, %v1283
      %v1348 = vpack.c.b16 %v1284, %v1284
      %v1349 = vpack.c.b16 %v1285, %v1285
      %v1350 = vpack.c.b16 %v1286, %v1286
      %v1351 = vpack.c.b16 %v1287, %v1287
      %v1352 = vpack.c.b16 %v1288, %v1288
      %v1353 = vpack.c.b16 %v1289, %v1289
      %v1354 = vpack.c.b16 %v1290, %v1290
      %v1355 = vpack.c.b16 %v1291, %v1291
      %v1356 = vpack.c.b16 %v1292, %v1292
      %v1357 = vpack.c.b16 %v1293, %v1293
      %v1358 = vpack.c.b16 %v1294, %v1294
      %v1359 = vpack.c.b16 %v1295, %v1295
      %v1360 = vpack.c.b16 %v1296, %v1296
      %v1361 = vpack.c.b16 %v1297, %v1297
      %v1362 = vpack.c.b16 %v1298, %v1298
      %v1363 = vpack.c.b16 %v1299, %v1299
      %v1364 = vpack.c.b16 %v1300, %v1300
      %v1365 = vpack.c.b16 %v1301, %v1301
      %v1366 = vpack.c.b16 %v1302, %v1302
      %v1367 = vpack.c.b16 %v1303, %v1303
      %v1368 = vpack.c.b16 %v1304, %v1304
      %v1369 = vpack.c.b16 %v1305, %v1305
      %v1370 = vpack.c.b16 %v1306, %v1306
      %v1371 = vpack.c.b16 %v1307, %v1307
      %v1372 = vpack.c.b16 %v1308, %v1308
      %v1373 = vpack.c.b16 %v1309, %v1309
      %v1374 = vpack.c.b16 %v1310, %v1310
      %v1375 = vpack.c.b16 %v1311, %v1311
      %v1376 = vpack.c.b16 %v1312, %v1312
      %v1377 = vpack.c.b16 %v1313, %v1313
      %v1378 = vpack.c.b16 %v1314, %v1314
      %v1379 = vpack.c.b16 %v1315, %v1315
      %v1380 = vpack.c.b16 %v1316, %v1316
      %v1381 = vpack.c.b16 %v1317, %v1317
      %v1382 = vpack.c.b16 %v1318, %v1318
      %v1383 = vpack.c.b16 %v1319, %v1319
      %v1384 = vpack.c.b16 %v1320, %v1320
      %v1385 = vpack.c.b16 %v1321, %v1321
      %v1386 = vpack.c.b16 %v1322, %v1322
      %v1387 = vpack.c.b16 %v1323, %v1323
      %v1388 = vpack.c.b16 %v1324, %v1324
      %v1389 = vpack.c.b16 %v1325, %v1325
      %v1390 = vpack.c.b16 %v1326, %v1326
      %v1391 = vpack.c.b16 %v1327, %v1327
      %v1392 = vpack.c.b16 %v1328, %v1328
      %v1393 = vpack.c.b16 %v1329, %v1329
      %v1394 = vpack.c.b16 %v1330, %v1330
      %v1395 = vpack.c.b16 %v1331, %v1331
      %v1396 = vpack.c.b16 %v1332, %v1332
      %v1397 = vpack.c.b16 %v1333, %v1333
      %v1398 = vpack.c.b16 %v1334, %v1334
      %v1399 = vpack.c.b16 %v1335, %v1335
      %v1400 = vpack.c.b16 %v1336, %v1336
      %v1401 = vpack.c.b16 %v1337, %v1337
      %v1402 = vpack.c.b16 %v1338, %v1338
      %v1403 = vpack.c.b16 %v1339, %v1339
      %1468 = vst [vmem:[%s226] sm:$0xf] %v1340
      %1469 = vst [vmem:[%s226 + $0x4] sm:$0xf] %v1341
      %1470 = vst [vmem:[%s226 + $0x8] sm:$0xf] %v1342
      %1471 = vst [vmem:[%s226 + $0xc] sm:$0xf] %v1343
      %1472 = vst [vmem:[%s226 + $0x10] sm:$0xf] %v1344
      %1473 = vst [vmem:[%s226 + $0x14] sm:$0xf] %v1345
      %1474 = vst [vmem:[%s226 + $0x18] sm:$0xf] %v1346
      %1475 = vst [vmem:[%s226 + $0x1c] sm:$0xf] %v1347
      %1476 = vst [vmem:[%s226 + $0x20] sm:$0xf] %v1348
      %1477 = vst [vmem:[%s226 + $0x24] sm:$0xf] %v1349
      %1478 = vst [vmem:[%s226 + $0x28] sm:$0xf] %v1350
      %1479 = vst [vmem:[%s226 + $0x2c] sm:$0xf] %v1351
      %1480 = vst [vmem:[%s226 + $0x30] sm:$0xf] %v1352
      %1481 = vst [vmem:[%s226 + $0x34] sm:$0xf] %v1353
      %1482 = vst [vmem:[%s226 + $0x38] sm:$0xf] %v1354
      %1483 = vst [vmem:[%s226 + $0x3c] sm:$0xf] %v1355
      %1484 = vst [vmem:[%s226 + $0x40] sm:$0xf] %v1356
      %1485 = vst [vmem:[%s226 + $0x44] sm:$0xf] %v1357
      %1486 = vst [vmem:[%s226 + $0x48] sm:$0xf] %v1358
      %1487 = vst [vmem:[%s226 + $0x4c] sm:$0xf] %v1359
      %1488 = vst [vmem:[%s226 + $0x50] sm:$0xf] %v1360
      %1489 = vst [vmem:[%s226 + $0x54] sm:$0xf] %v1361
      %1490 = vst [vmem:[%s226 + $0x58] sm:$0xf] %v1362
      %1491 = vst [vmem:[%s226 + $0x5c] sm:$0xf] %v1363
      %1492 = vst [vmem:[%s226 + $0x60] sm:$0xf] %v1364
      %1493 = vst [vmem:[%s226 + $0x64] sm:$0xf] %v1365
      %1494 = vst [vmem:[%s226 + $0x68] sm:$0xf] %v1366
      %1495 = vst [vmem:[%s226 + $0x6c] sm:$0xf] %v1367
      %1496 = vst [vmem:[%s226 + $0x70] sm:$0xf] %v1368
      %1497 = vst [vmem:[%s226 + $0x74] sm:$0xf] %v1369
      %1498 = vst [vmem:[%s226 + $0x78] sm:$0xf] %v1370
      %1499 = vst [vmem:[%s226 + $0x7c] sm:$0xf] %v1371
      %1500 = vst [vmem:[%s226 + $0x80] sm:$0xf] %v1372
      %1501 = vst [vmem:[%s226 + $0x84] sm:$0xf] %v1373
      %1502 = vst [vmem:[%s226 + $0x88] sm:$0xf] %v1374
      %1503 = vst [vmem:[%s226 + $0x8c] sm:$0xf] %v1375
      %1504 = vst [vmem:[%s226 + $0x90] sm:$0xf] %v1376
      %1505 = vst [vmem:[%s226 + $0x94] sm:$0xf] %v1377
      %1506 = vst [vmem:[%s226 + $0x98] sm:$0xf] %v1378
      %1507 = vst [vmem:[%s226 + $0x9c] sm:$0xf] %v1379
      %1508 = vst [vmem:[%s226 + $0xa0] sm:$0xf] %v1380
      %1509 = vst [vmem:[%s226 + $0xa4] sm:$0xf] %v1381
      %1510 = vst [vmem:[%s226 + $0xa8] sm:$0xf] %v1382
      %1511 = vst [vmem:[%s226 + $0xac] sm:$0xf] %v1383
      %1512 = vst [vmem:[%s226 + $0xb0] sm:$0xf] %v1384
      %1513 = vst [vmem:[%s226 + $0xb4] sm:$0xf] %v1385
      %1514 = vst [vmem:[%s226 + $0xb8] sm:$0xf] %v1386
      %1515 = vst [vmem:[%s226 + $0xbc] sm:$0xf] %v1387
      %1516 = vst [vmem:[%s226 + $0xc0] sm:$0xf] %v1388
      %1517 = vst [vmem:[%s226 + $0xc4] sm:$0xf] %v1389
      %1518 = vst [vmem:[%s226 + $0xc8] sm:$0xf] %v1390
      %1519 = vst [vmem:[%s226 + $0xcc] sm:$0xf] %v1391
      %1520 = vst [vmem:[%s226 + $0xd0] sm:$0xf] %v1392
      %1521 = vst [vmem:[%s226 + $0xd4] sm:$0xf] %v1393
      %1522 = vst [vmem:[%s226 + $0xd8] sm:$0xf] %v1394
      %1523 = vst [vmem:[%s226 + $0xdc] sm:$0xf] %v1395
      %1524 = vst [vmem:[%s226 + $0xe0] sm:$0xf] %v1396
      %1525 = vst [vmem:[%s226 + $0xe4] sm:$0xf] %v1397
      %1526 = vst [vmem:[%s226 + $0xe8] sm:$0xf] %v1398
      %1527 = vst [vmem:[%s226 + $0xec] sm:$0xf] %v1399
      %1528 = vst [vmem:[%s226 + $0xf0] sm:$0xf] %v1400
      %1529 = vst [vmem:[%s226 + $0xf4] sm:$0xf] %v1401
      %1530 = vst [vmem:[%s226 + $0xf8] sm:$0xf] %v1402
      %1531 = vst [vmem:[%s226 + $0xfc] sm:$0xf] %v1403
      %s1532 = smul.u32 64, %s16
      %p1533 = scmp.lt.s32.totalorder %s1532, 127
      %s1534 = scalar_select %p1533, %s1532, 127
      %s1535 = smul.addr %s1534, 4
      %s1536 = scalar_lea.vmem %s5, %s1535
      // Predicated region
      $region41: #{deconv_bn_prelu.3} parent=39 // pred_check
        %p1537 = pneg %p144
      $region42: #{deconv_bn_prelu.3} parent=39 // pred_check_branch
        %1539 = sbr.rel (%p1537) target = $region44
      $region43: #{deconv_bn_prelu.3} parent=39 // pred_region
        %s1540 = smul.u32 64, %s16
      $region44: #{deconv_bn_prelu.3} parent=39 // pred_fallthru
        _
    $region40: #{deconv_bn_prelu.3} parent=5 // pred_fallthru
      _
    %p1541 = scmp.le.s32.totalorder 2, %s11
    // Predicated region
    $region45: #{deconv_bn_prelu.3} parent=5 // pred_check
      %p1542 = pneg %p1541
    $region46: #{deconv_bn_prelu.3} parent=5 // pred_check_branch
      %1544 = sbr.rel (%p1542) target = $region48
    $region47: #{deconv_bn_prelu.3} parent=5 // pred_region
      %s1545 = ssub.s32 %s11, 2
      // Predicated region
      $region49: #{deconv_bn_prelu.3} parent=47 // pred_check
        %p1546 = pneg %p150
      $region50: #{deconv_bn_prelu.3} parent=47 // pred_check_branch
        %1548 = sbr.rel (%p1546) target = $region52
      $region51: #{deconv_bn_prelu.3} parent=47 // pred_region
        %s1549 = smul.u32 64, %s17
        %p1550 = scmp.lt.s32.totalorder %s1549, 127
        %s1551 = scalar_select %p1550, %s1549, 127
        %s1552 = smul.addr %s1551, 4
        %s1553 = scalar_lea.vmem %s5, %s1552
      $region52: #{deconv_bn_prelu.3} parent=47 // pred_fallthru
        _
    $region48: #{deconv_bn_prelu.3} parent=5 // pred_fallthru
      _
  $region6: #{deconv_bn_prelu.3} parent=0 // loop_footer
    %s15 = sadd.s32 1, %s11
  $region7: #{deconv_bn_prelu.3} parent=0 // loop_footer_branch
    %10 = sbr.rel target = $region3
  $region8: #{deconv_bn_prelu.3} parent=0 // loop_exit
    _

</llo_original>
